<compile_context>
chip_gen: v5e
topology: v5e:2x2
jax: 0.10.0
libtpu: 0.0.40
codegen_flags: <defaults>
</compile_context>

<pallas_src>
import functools

import jax
import jax.numpy as jnp
from jax import lax
from jax.experimental import pallas as pl
from jax.experimental.pallas import tpu as pltpu


def _codebook_kernel(z_ref, e_ref, esqh_ref, zq_ref, idx_ref, lsum_ref, *,
                     cross_bf16: bool = False):
    z = z_ref[...]                                # (TN, D) f32
    e = e_ref[...]                                # (K, D)  f32
    tn = z.shape[0]
    k = e.shape[0]

    # cross = z @ E^T, contracting the shared latent axis directly so no
    # transposed copy of the (resident) codebook is materialized per grid step.
    if cross_bf16:
        cross = lax.dot_general(
            z.astype(jnp.bfloat16), e.astype(jnp.bfloat16),
            dimension_numbers=(((1,), (1,)), ((), ())),
            preferred_element_type=jnp.float32)                      # (TN, K) MXU
    else:
        cross = lax.dot_general(
            z, e, dimension_numbers=(((1,), (1,)), ((), ())),
            preferred_element_type=jnp.float32)                      # (TN, K) MXU

    # d' = 0.5*||E||^2 - z @ E^T   (same argmin as ||z||^2 + ||E||^2 - 2 z E^T)
    d = esqh_ref[...] - cross                                        # (TN, K) VPU

    # First-occurrence argmin over the codebook axis (matches torch.argmin).
    # min_d is reused below for the loss identity, so both XLU reduces pay off.
    min_d = jnp.min(d, axis=1, keepdims=True)                        # (TN, 1) XLU
    iota = lax.broadcasted_iota(jnp.int32, (tn, k), 1)               # (TN, K)
    idx = jnp.min(jnp.where(d == min_d, iota, k), axis=1)            # (TN,)   XLU

    # Embedding gather as one-hot matmul (MXU-friendly, exact in f32).
    onehot = (iota == idx[:, None]).astype(jnp.float32)              # (TN, K)
    zq = jnp.dot(onehot, e, preferred_element_type=jnp.float32)      # (TN, D) MXU

    zq_ref[...] = zq.astype(zq_ref.dtype)
    idx_ref[...] = idx[None, None, :].astype(jnp.int32)              # lane-dense store

    # Per-row loss partial via ||z_q - z||^2 = ||z||^2 + 2*min_d; the final
    # (1+beta)/total mean is done in the wrapper on the valid rows only.
    zsq = jnp.sum(z * z, axis=1, keepdims=True)                      # (TN, 1)
    lsum_ref[...] = (zsq + 2.0 * min_d)[:, 0][None, None, :]         # lane-dense store


def codebook_forward(z, embedding, beta, *, tile_n=1024, cross_bf16=False):
    """Pallas implementation of Codebook.forward.

    z:         (..., latent_dim) float32 (flattened to (N, latent_dim))
    embedding: (num_codebook_vectors, latent_dim) float32
    returns (z_q (N, D), min_encoding_indices (N,) int32, loss scalar)
    """
    latent_dim = embedding.shape[1]
    z2d = z.reshape(-1, latent_dim).astype(jnp.float32)
    n, d = z2d.shape
    k = embedding.shape[0]

    # Clamp tile size to the (128-aligned) problem size, keep lane/sublane alignment.
    tile_n = min(tile_n, max(128, -(-n // 128) * 128))
    num_tiles = -(-n // tile_n)
    n_pad = num_tiles * tile_n
    z_in = jnp.pad(z2d, ((0, n_pad - n), (0, 0))) if n_pad != n else z2d

    emb = embedding.astype(jnp.float32)
    # 0.5*||E||^2 precomputed once in plain JAX (tiny), shape (1, K) for broadcast.
    esq_half = (0.5 * jnp.sum(emb * emb, axis=1))[None, :].astype(jnp.float32)

    kernel = functools.partial(_codebook_kernel, cross_bf16=cross_bf16)

    zq_pad, idx_tiles, rowsq_tiles = pl.pallas_call(
        kernel,
        out_shape=(jax.ShapeDtypeStruct((n_pad, d), jnp.float32),
                   jax.ShapeDtypeStruct((num_tiles, 1, tile_n), jnp.int32),
                   jax.ShapeDtypeStruct((num_tiles, 1, tile_n), jnp.float32)),
        grid_spec=pltpu.PrefetchScalarGridSpec(
            num_scalar_prefetch=0,
            grid=(num_tiles,),
            in_specs=[pl.BlockSpec((tile_n, d), lambda i: (i, 0)),   # z tile
                      pl.BlockSpec((k, d), lambda i: (0, 0)),        # full codebook
                      pl.BlockSpec((1, k), lambda i: (0, 0))],       # 0.5*||E||^2
            out_specs=(pl.BlockSpec((tile_n, d), lambda i: (i, 0)),        # z_q tile
                       pl.BlockSpec((1, 1, tile_n), lambda i: (i, 0, 0)),  # indices
                       pl.BlockSpec((1, 1, tile_n), lambda i: (i, 0, 0)))),  # loss partials
        compiler_params=pltpu.CompilerParams(
            # Each tile is independent -> megacore/2-TC sharding OK on v7x.
            dimension_semantics=("parallel",),
            # Headroom for tile_n up to 2048 (working set ~4 MiB); safe on all gens.
            vmem_limit_bytes=32 * 1024 * 1024),
    )(z_in, emb, esq_half)

    zq = zq_pad[:n]
    idx = idx_tiles.reshape(-1)[:n]
    # loss = mean((zq.detach()-z)^2) + beta*mean((zq-z.detach())^2)
    # forward value == (1 + beta) * mean((zq - z)^2); padded rows sliced away.
    loss = (1.0 + float(beta)) * jnp.sum(rowsq_tiles.reshape(-1)[:n]) / float(n * d)
    # torch: z_q = z + (z_q - z).detach() -> same forward value as z_q
    return zq, idx, loss


def codebook_forward_ref(z, embedding, beta):
    """Pure-JAX reference matching the torch forward values (full distance formula)."""
    d = (jnp.sum(z ** 2, axis=1, keepdims=True)
         + jnp.sum(embedding ** 2, axis=1)
         - 2.0 * z @ embedding.T)
    idx = jnp.argmin(d, axis=1)
    zq = embedding[idx]
    loss = jnp.mean((zq - z) ** 2) * (1.0 + beta)
    return zq, idx.astype(jnp.int32), loss


def _check(zq, idx, loss, z, embedding, beta, n_tokens, latent_dim):
    zq_r, idx_r, loss_r = codebook_forward_ref(z, embedding, beta)
    assert zq.shape == (n_tokens, latent_dim) and idx.shape == (n_tokens,)

    # gather correctness: z_q must equal the embedding rows selected by the kernel
    assert jnp.allclose(zq, embedding[idx], atol=1e-6), "z_q gather mismatch"

    # index check vs full-formula reference; allow disagreement only on fp near-ties
    match = idx == idx_r
    if not bool(jnp.all(match)):
        d_full = (jnp.sum(z ** 2, axis=1, keepdims=True)
                  + jnp.sum(embedding ** 2, axis=1)
                  - 2.0 * z @ embedding.T)
        rows = jnp.where(~match)[0]
        gap = jnp.abs(d_full[rows, idx[rows]] - d_full[rows, idx_r[rows]])
        assert bool(jnp.all(gap < 1e-6)), "index mismatch beyond fp tie tolerance"

    # z_q matches reference wherever the indices agree
    assert jnp.allclose(jnp.where(match[:, None], zq - zq_r, 0.0), 0.0, atol=1e-6), \
        "z_q mismatch vs reference"
    assert jnp.allclose(loss, loss_r, atol=1e-7, rtol=1e-4), "loss mismatch vs reference"


if __name__ == "__main__":
    # args: num_codebook_vectors=128, latent_dim=32, beta=0.25
    num_codebook_vectors = 128
    latent_dim = 32
    beta = 0.25
    n_tokens = 256  # e.g. batch=1, 16x16 latent grid flattened

    key = jax.random.PRNGKey(0)
    k_emb, k_z = jax.random.split(key)

    # embedding.weight.data.uniform_(-1/K, 1/K)
    embedding = jax.random.uniform(
        k_emb, (num_codebook_vectors, latent_dim), dtype=jnp.float32,
        minval=-1.0 / num_codebook_vectors, maxval=1.0 / num_codebook_vectors)

    z = jax.random.normal(k_z, (n_tokens, latent_dim), dtype=jnp.float32) * 0.01

    # Default (single-tile after clamping) run.
    zq, idx, loss = codebook_forward(z, embedding, beta)
    jax.block_until_ready((zq, idx, loss))
    _check(zq, idx, loss, z, embedding, beta, n_tokens, latent_dim)

    # Multi-tile run (tile_n=128 -> 2 grid steps) to exercise the pipelined grid path.
    zq2, idx2, loss2 = codebook_forward(z, embedding, beta, tile_n=128)
    jax.block_until_ready((zq2, idx2, loss2))
    _check(zq2, idx2, loss2, z, embedding, beta, n_tokens, latent_dim)
    assert bool(jnp.all(idx == idx2)), "tile-size dependence in indices"
    assert jnp.allclose(zq, zq2, atol=1e-6), "tile-size dependence in z_q"
    assert jnp.allclose(loss, loss2, atol=1e-7, rtol=1e-5), "tile-size dependence in loss"

    print("KERNEL_OK")
</pallas_src>

<mosaic_0001>
module attributes {stable_mosaic.version = 11 : i64} {
  func.func @_codebook_kernel(%arg0: i32, %arg1: memref<256x32xf32, #tpu.memory_space<vmem>>, %arg2: memref<128x32xf32, #tpu.memory_space<vmem>>, %arg3: memref<1x128xf32, #tpu.memory_space<vmem>>, %arg4: memref<256x32xf32, #tpu.memory_space<vmem>>, %arg5: memref<1x1x256xi32, #tpu.memory_space<vmem>>, %arg6: memref<1x1x256xf32, #tpu.memory_space<vmem>>) attributes {dimension_semantics = [#tpu.dimension_semantics<parallel>], iteration_bounds = array<i64: 1>, scalar_prefetch = 0 : i64, scratch_operands = 0 : i64, tpu.core_type = #tpu.core_type<tc>, window_params = [{transform_indices = @transform_0, window_bounds = array<i64: 256, 32>}, {pipeline_mode = #tpu.pipeline_mode<synchronous>, transform_indices = @transform_1, window_bounds = array<i64: 128, 32>}, {pipeline_mode = #tpu.pipeline_mode<synchronous>, transform_indices = @transform_2, window_bounds = array<i64: 1, 128>}, {transform_indices = @transform_3, window_bounds = array<i64: 256, 32>}, {transform_indices = @transform_4, window_bounds = array<i64: 1, 1, 256>}, {transform_indices = @transform_5, window_bounds = array<i64: 1, 1, 256>}]} {
    %c0 = arith.constant 0 : index
    %c0_0 = arith.constant 0 : index
    %0 = vector.load %arg1[%c0, %c0_0] : memref<256x32xf32, #tpu.memory_space<vmem>>, vector<256x32xf32>
    %c0_1 = arith.constant 0 : index
    %c0_2 = arith.constant 0 : index
    %1 = vector.load %arg2[%c0_1, %c0_2] : memref<128x32xf32, #tpu.memory_space<vmem>>, vector<128x32xf32>
    %cst = arith.constant dense<0.000000e+00> : vector<256x128xf32>
    %2 = tpu.matmul %0, %1, %cst {dimension_numbers = #tpu.dot_dimension_numbers<[1], [1], [0], [0], [0, 0, 1, 0], [], []>} : vector<256x32xf32>, vector<128x32xf32>, vector<256x128xf32> -> vector<256x128xf32>
    %c0_3 = arith.constant 0 : index
    %c0_4 = arith.constant 0 : index
    %3 = vector.load %arg3[%c0_3, %c0_4] : memref<1x128xf32, #tpu.memory_space<vmem>>, vector<1x128xf32>
    %4 = vector.broadcast %3 : vector<1x128xf32> to vector<256x128xf32>
    %5 = arith.subf %4, %2 : vector<256x128xf32>
    %cst_5 = arith.constant dense<0x7F800000> : vector<256xf32>
    %6 = vector.multi_reduction <minimumf>, %5, %cst_5 [1] : vector<256x128xf32> to vector<256xf32>
    %7 = vector.shape_cast %6 : vector<256xf32> to vector<256x1xf32>
    %8 = tpu.iota {dimensions = array<i32: 1>} : vector<256x128xi32>
    %9 = vector.broadcast %7 : vector<256x1xf32> to vector<256x128xf32>
    %10 = arith.cmpf oeq, %5, %9 : vector<256x128xf32>
    %c128_i32 = arith.constant 128 : i32
    %11 = vector.broadcast %c128_i32 : i32 to vector<256x128xi32>
    %12 = arith.select %10, %8, %11 : vector<256x128xi1>, vector<256x128xi32>
    %cst_6 = arith.constant dense<2147483647> : vector<256xi32>
    %13 = vector.multi_reduction <minsi>, %12, %cst_6 [1] : vector<256x128xi32> to vector<256xi32>
    %14 = vector.shape_cast %13 : vector<256xi32> to vector<256x1xi32>
    %15 = vector.broadcast %14 : vector<256x1xi32> to vector<256x128xi32>
    %16 = arith.cmpi eq, %8, %15 : vector<256x128xi32>
    %17 = arith.extui %16 : vector<256x128xi1> to vector<256x128xi32>
    %18 = arith.sitofp %17 : vector<256x128xi32> to vector<256x128xf32>
    %cst_7 = arith.constant dense<0.000000e+00> : vector<256x32xf32>
    %19 = tpu.matmul %18, %1, %cst_7 {dimension_numbers = #tpu.dot_dimension_numbers<[1], [0], [0], [1], [0, 0, 1, 1], [], []>} : vector<256x128xf32>, vector<128x32xf32>, vector<256x32xf32> -> vector<256x32xf32>
    %c0_8 = arith.constant 0 : index
    %c0_9 = arith.constant 0 : index
    %20 = vector.load %arg4[%c0_8, %c0_9] : memref<256x32xf32, #tpu.memory_space<vmem>>, vector<256x32xf32>
    tpu.vector_store %arg4[%c0_8, %c0_9], %19 {strides = array<i32>} : memref<256x32xf32, #tpu.memory_space<vmem>>, vector<256x32xf32>,
    %21 = vector.shape_cast %13 : vector<256xi32> to vector<1x1x256xi32>
    %c0_10 = arith.constant 0 : index
    %c0_11 = arith.constant 0 : index
    %c0_12 = arith.constant 0 : index
    %22 = vector.load %arg5[%c0_10, %c0_11, %c0_12] : memref<1x1x256xi32, #tpu.memory_space<vmem>>, vector<1x1x256xi32>
    tpu.vector_store %arg5[%c0_10, %c0_11, %c0_12], %21 {strides = array<i32>} : memref<1x1x256xi32, #tpu.memory_space<vmem>>, vector<1x1x256xi32>,
    %23 = arith.mulf %0, %0 : vector<256x32xf32>
    %cst_13 = arith.constant dense<0.000000e+00> : vector<256xf32>
    %24 = vector.multi_reduction <add>, %23, %cst_13 [1] : vector<256x32xf32> to vector<256xf32>
    %25 = vector.shape_cast %24 : vector<256xf32> to vector<256x1xf32>
    %cst_14 = arith.constant 2.000000e+00 : f32
    %26 = vector.broadcast %cst_14 : f32 to vector<256x1xf32>
    %27 = arith.mulf %26, %7 : vector<256x1xf32>
    %28 = arith.addf %25, %27 : vector<256x1xf32>
    %29 = vector.shape_cast %28 : vector<256x1xf32> to vector<256xf32>
    %30 = vector.shape_cast %29 : vector<256xf32> to vector<1x1x256xf32>
    %c0_15 = arith.constant 0 : index
    %c0_16 = arith.constant 0 : index
    %c0_17 = arith.constant 0 : index
    %31 = vector.load %arg6[%c0_15, %c0_16, %c0_17] : memref<1x1x256xf32, #tpu.memory_space<vmem>>, vector<1x1x256xf32>
    tpu.vector_store %arg6[%c0_15, %c0_16, %c0_17], %30 {strides = array<i32>} : memref<1x1x256xf32, #tpu.memory_space<vmem>>, vector<1x1x256xf32>,
    return
  }
  func.func @transform_0(%arg0: i32) -> (i32, i32) {
    %c0_i32 = arith.constant 0 : i32
    %c0_i32_0 = arith.constant 0 : i32
    return %arg0, %c0_i32 : i32, i32
  }
  func.func @transform_1(%arg0: i32) -> (i32, i32) {
    %c0_i32 = arith.constant 0 : i32
    %c0_i32_0 = arith.constant 0 : i32
    %c0_i32_1 = arith.constant 0 : i32
    return %c0_i32, %c0_i32_0 : i32, i32
  }
  func.func @transform_2(%arg0: i32) -> (i32, i32) {
    %c0_i32 = arith.constant 0 : i32
    %c0_i32_0 = arith.constant 0 : i32
    %c0_i32_1 = arith.constant 0 : i32
    return %c0_i32, %c0_i32_0 : i32, i32
  }
  func.func @transform_3(%arg0: i32) -> (i32, i32) {
    %c0_i32 = arith.constant 0 : i32
    %c0_i32_0 = arith.constant 0 : i32
    return %arg0, %c0_i32 : i32, i32
  }
  func.func @transform_4(%arg0: i32) -> (i32, i32, i32) {
    %c0_i32 = arith.constant 0 : i32
    %c0_i32_0 = arith.constant 0 : i32
    %c0_i32_1 = arith.constant 0 : i32
    return %arg0, %c0_i32, %c0_i32_0 : i32, i32, i32
  }
  func.func @transform_5(%arg0: i32) -> (i32, i32, i32) {
    %c0_i32 = arith.constant 0 : i32
    %c0_i32_0 = arith.constant 0 : i32
    %c0_i32_1 = arith.constant 0 : i32
    return %arg0, %c0_i32, %c0_i32_0 : i32, i32, i32
  }
}

</mosaic_0001>

<llo_original>
// kernel: tpu_custom_call.1
$region0: #{tpu_custom_call.1}
  #allocation0 [shape = 'u32[]', space=smem, size = 0x4, offset = 0x4, fixed_abs, tag = 'smem constant byte address 0x4 - core index']
  #allocation1 [shape = 'u32[72,128]{1,0:T(1,128)}', space=vmem, size = 0x9000, scoped, tag = 'internal scratch']
  %s0 = inlined_call_operand.vmem [shape: f32[256,32], index: 0, kind: input, shape index: {}]
  %s1 = inlined_call_operand.vmem [shape: f32[128,32], index: 1, kind: input, shape index: {}]
  %s2 = inlined_call_operand.vmem [shape: f32[1,128], index: 2, kind: input, shape index: {}]
  %s3 = inlined_call_operand.vmem [shape: f32[256,32], index: 3, kind: output, shape index: {0}]
  %s4 = inlined_call_operand.hbm [shape: s32[1,1,256], index: 4, kind: output, shape index: {1}]
  %s5 = inlined_call_operand.hbm [shape: f32[1,1,256], index: 5, kind: output, shape index: {2}]
  %6 = xla_tuple %s3, %s4, %s5
  %s7 = sld [smem:[#allocation0]]
  $region38: #{tpu_custom_call.1} parent=0
    _
  %s9 = ssub.s32 1, %s7
  %s10 = scalar_select 0, %s9, %s7
  $region1: #{tpu_custom_call.1} parent=0
    #allocation2 [shape = 'u8[1024]{0}', space=vmem, size = 0x400, scoped, tag = 'output window, operand 1, single buffered']
    #allocation3 [shape = 's32[1]{0}', space=sflag, size = 0x4, scoped, tag = 'scoped memory for tpu_custom_call.1']
    #allocation4 [shape = 'u8[1024]{0}', space=vmem, size = 0x400, scoped, tag = 'output window, operand 2, single buffered']
    #allocation5 [shape = 's32[1]{0}', space=sflag, size = 0x4, scoped, tag = 'scoped memory for tpu_custom_call.1']
    %11 = vsyncpa [#allocation3], 0
    %12 = vsyncpa [#allocation5], 0
    // Predicated region
    $region2: #{tpu_custom_call.1} parent=1 // pred_check
      _
    $region3: #{tpu_custom_call.1} parent=1 // pred_check_branch
      %14 = sbr.rel (0) target = $region5
    $region4: #{tpu_custom_call.1} parent=1 // pred_region
      _
    $region5: #{tpu_custom_call.1} parent=1 // pred_fallthru
      _
    // Predicated region
    $region6: #{tpu_custom_call.1} parent=1 // pred_check
      _
    $region7: #{tpu_custom_call.1} parent=1 // pred_check_branch
      %16 = sbr.rel (0) target = $region9
    $region8: #{tpu_custom_call.1} parent=1 // pred_region
      _
    $region9: #{tpu_custom_call.1} parent=1 // pred_fallthru
      _
    // Predicated region
    $region10: #{tpu_custom_call.1} parent=1 // pred_check
      _
    $region11: #{tpu_custom_call.1} parent=1 // pred_check_branch
      %18 = sbr.rel (0) target = $region13
    $region12: #{tpu_custom_call.1} parent=1 // pred_region
      _
    $region13: #{tpu_custom_call.1} parent=1 // pred_fallthru
      _
    %v19 = vld [vmem:[%s0] sm:$0xff]
    %v20 = vld [vmem:[%s0 + $0x8] sm:$0xff]
    %v21 = vld [vmem:[%s0 + $0x10] sm:$0xff]
    %v22 = vld [vmem:[%s0 + $0x18] sm:$0xff]
    %v23 = vld [vmem:[%s0 + $0x20] sm:$0xff]
    %v24 = vld [vmem:[%s0 + $0x28] sm:$0xff]
    %v25 = vld [vmem:[%s0 + $0x30] sm:$0xff]
    %v26 = vld [vmem:[%s0 + $0x38] sm:$0xff]
    %v27 = vld [vmem:[%s0 + $0x40] sm:$0xff]
    %v28 = vld [vmem:[%s0 + $0x48] sm:$0xff]
    %v29 = vld [vmem:[%s0 + $0x50] sm:$0xff]
    %v30 = vld [vmem:[%s0 + $0x58] sm:$0xff]
    %v31 = vld [vmem:[%s0 + $0x60] sm:$0xff]
    %v32 = vld [vmem:[%s0 + $0x68] sm:$0xff]
    %v33 = vld [vmem:[%s0 + $0x70] sm:$0xff]
    %v34 = vld [vmem:[%s0 + $0x78] sm:$0xff]
    %v35 = vld [vmem:[%s0 + $0x80] sm:$0xff]
    %v36 = vld [vmem:[%s0 + $0x88] sm:$0xff]
    %v37 = vld [vmem:[%s0 + $0x90] sm:$0xff]
    %v38 = vld [vmem:[%s0 + $0x98] sm:$0xff]
    %v39 = vld [vmem:[%s0 + $0xa0] sm:$0xff]
    %v40 = vld [vmem:[%s0 + $0xa8] sm:$0xff]
    %v41 = vld [vmem:[%s0 + $0xb0] sm:$0xff]
    %v42 = vld [vmem:[%s0 + $0xb8] sm:$0xff]
    %v43 = vld [vmem:[%s0 + $0xc0] sm:$0xff]
    %v44 = vld [vmem:[%s0 + $0xc8] sm:$0xff]
    %v45 = vld [vmem:[%s0 + $0xd0] sm:$0xff]
    %v46 = vld [vmem:[%s0 + $0xd8] sm:$0xff]
    %v47 = vld [vmem:[%s0 + $0xe0] sm:$0xff]
    %v48 = vld [vmem:[%s0 + $0xe8] sm:$0xff]
    %v49 = vld [vmem:[%s0 + $0xf0] sm:$0xff]
    %v50 = vld [vmem:[%s0 + $0xf8] sm:$0xff]
    %v51 = vld [vmem:[%s1] sm:$0xff]
    %v52 = vld [vmem:[%s1 + $0x8] sm:$0xff]
    %v53 = vld [vmem:[%s1 + $0x10] sm:$0xff]
    %v54 = vld [vmem:[%s1 + $0x18] sm:$0xff]
    %v55 = vld [vmem:[%s1 + $0x20] sm:$0xff]
    %v56 = vld [vmem:[%s1 + $0x28] sm:$0xff]
    %v57 = vld [vmem:[%s1 + $0x30] sm:$0xff]
    %v58 = vld [vmem:[%s1 + $0x38] sm:$0xff]
    %v59 = vld [vmem:[%s1 + $0x40] sm:$0xff]
    %v60 = vld [vmem:[%s1 + $0x48] sm:$0xff]
    %v61 = vld [vmem:[%s1 + $0x50] sm:$0xff]
    %v62 = vld [vmem:[%s1 + $0x58] sm:$0xff]
    %v63 = vld [vmem:[%s1 + $0x60] sm:$0xff]
    %v64 = vld [vmem:[%s1 + $0x68] sm:$0xff]
    %v65 = vld [vmem:[%s1 + $0x70] sm:$0xff]
    %v66 = vld [vmem:[%s1 + $0x78] sm:$0xff]
    %vm67 = vcmask 261120
    %v69 = vsel %vm67, %v19, 0
    %v72 = vsel %vm67, %v20, 0
    %v75 = vsel %vm67, %v21, 0
    %v78 = vsel %vm67, %v22, 0
    %v81 = vsel %vm67, %v23, 0
    %v84 = vsel %vm67, %v24, 0
    %v87 = vsel %vm67, %v25, 0
    %v90 = vsel %vm67, %v26, 0
    %v93 = vsel %vm67, %v27, 0
    %v96 = vsel %vm67, %v28, 0
    %v99 = vsel %vm67, %v29, 0
    %v102 = vsel %vm67, %v30, 0
    %v105 = vsel %vm67, %v31, 0
    %v108 = vsel %vm67, %v32, 0
    %v111 = vsel %vm67, %v33, 0
    %v114 = vsel %vm67, %v34, 0
    %v117 = vsel %vm67, %v35, 0
    %v120 = vsel %vm67, %v36, 0
    %v123 = vsel %vm67, %v37, 0
    %v126 = vsel %vm67, %v38, 0
    %v129 = vsel %vm67, %v39, 0
    %v132 = vsel %vm67, %v40, 0
    %v135 = vsel %vm67, %v41, 0
    %v138 = vsel %vm67, %v42, 0
    %v141 = vsel %vm67, %v43, 0
    %v144 = vsel %vm67, %v44, 0
    %v147 = vsel %vm67, %v45, 0
    %v150 = vsel %vm67, %v46, 0
    %v153 = vsel %vm67, %v47, 0
    %v156 = vsel %vm67, %v48, 0
    %v159 = vsel %vm67, %v49, 0
    %v162 = vsel %vm67, %v50, 0
    %v165 = vsel %vm67, %v51, 0
    %v168 = vsel %vm67, %v52, 0
    %v171 = vsel %vm67, %v53, 0
    %v174 = vsel %vm67, %v54, 0
    %v177 = vsel %vm67, %v55, 0
    %v180 = vsel %vm67, %v56, 0
    %v183 = vsel %vm67, %v57, 0
    %v186 = vsel %vm67, %v58, 0
    %v189 = vsel %vm67, %v59, 0
    %v192 = vsel %vm67, %v60, 0
    %v195 = vsel %vm67, %v61, 0
    %v198 = vsel %vm67, %v62, 0
    %v201 = vsel %vm67, %v63, 0
    %v204 = vsel %vm67, %v64, 0
    %v207 = vsel %vm67, %v65, 0
    %v210 = vsel %vm67, %v66, 0
    %212 = vmatpush.xpose.msra.mxu0 %v210
    %213 = vmatpush.xpose.msra.mxu0 %v207
    %214 = vmatpush.xpose.msra.mxu0 %v204
    %215 = vmatpush.xpose.msra.mxu0 %v201
    %216 = vmatpush.xpose.msra.mxu0 %v198
    %217 = vmatpush.xpose.msra.mxu0 %v195
    %218 = vmatpush.xpose.msra.mxu0 %v192
    %219 = vmatpush.xpose.msra.mxu0 %v189
    %220 = vmatpush.xpose.msra.mxu0 %v186
    %221 = vmatpush.xpose.msra.mxu0 %v183
    %222 = vmatpush.xpose.msra.mxu0 %v180
    %223 = vmatpush.xpose.msra.mxu0 %v177
    %224 = vmatpush.xpose.msra.mxu0 %v174
    %225 = vmatpush.xpose.msra.mxu0 %v171
    %226 = vmatpush.xpose.msra.mxu0 %v168
    %227 = vmatpush.xpose.msra.mxu0 %v165
    %228 = vmatmul.f32.gmra.mxu0 %v69
    %v229 = vpop.f32.mrf.mxu0
    %v230 = vadd.f32 0.0, %v229
    %231 = vmatmul.f32.gmra.mxu0 %v72
    %v232 = vpop.f32.mrf.mxu0
    %v233 = vadd.f32 0.0, %v232
    %234 = vmatmul.f32.gmra.mxu0 %v75
    %v235 = vpop.f32.mrf.mxu0
    %v236 = vadd.f32 0.0, %v235
    %237 = vmatmul.f32.gmra.mxu0 %v78
    %v238 = vpop.f32.mrf.mxu0
    %v239 = vadd.f32 0.0, %v238
    %240 = vmatmul.f32.gmra.mxu0 %v81
    %v241 = vpop.f32.mrf.mxu0
    %v242 = vadd.f32 0.0, %v241
    %243 = vmatmul.f32.gmra.mxu0 %v84
    %v244 = vpop.f32.mrf.mxu0
    %v245 = vadd.f32 0.0, %v244
    %246 = vmatmul.f32.gmra.mxu0 %v87
    %v247 = vpop.f32.mrf.mxu0
    %v248 = vadd.f32 0.0, %v247
    %249 = vmatmul.f32.gmra.mxu0 %v90
    %v250 = vpop.f32.mrf.mxu0
    %v251 = vadd.f32 0.0, %v250
    %252 = vmatmul.f32.gmra.mxu0 %v93
    %v253 = vpop.f32.mrf.mxu0
    %v254 = vadd.f32 0.0, %v253
    %255 = vmatmul.f32.gmra.mxu0 %v96
    %v256 = vpop.f32.mrf.mxu0
    %v257 = vadd.f32 0.0, %v256
    %258 = vmatmul.f32.gmra.mxu0 %v99
    %v259 = vpop.f32.mrf.mxu0
    %v260 = vadd.f32 0.0, %v259
    %261 = vmatmul.f32.gmra.mxu0 %v102
    %v262 = vpop.f32.mrf.mxu0
    %v263 = vadd.f32 0.0, %v262
    %264 = vmatmul.f32.gmra.mxu0 %v105
    %v265 = vpop.f32.mrf.mxu0
    %v266 = vadd.f32 0.0, %v265
    %267 = vmatmul.f32.gmra.mxu0 %v108
    %v268 = vpop.f32.mrf.mxu0
    %v269 = vadd.f32 0.0, %v268
    %270 = vmatmul.f32.gmra.mxu0 %v111
    %v271 = vpop.f32.mrf.mxu0
    %v272 = vadd.f32 0.0, %v271
    %273 = vmatmul.f32.gmra.mxu0 %v114
    %v274 = vpop.f32.mrf.mxu0
    %v275 = vadd.f32 0.0, %v274
    %276 = vmatmul.f32.gmra.mxu0 %v117
    %v277 = vpop.f32.mrf.mxu0
    %v278 = vadd.f32 0.0, %v277
    %279 = vmatmul.f32.gmra.mxu0 %v120
    %v280 = vpop.f32.mrf.mxu0
    %v281 = vadd.f32 0.0, %v280
    %282 = vmatmul.f32.gmra.mxu0 %v123
    %v283 = vpop.f32.mrf.mxu0
    %v284 = vadd.f32 0.0, %v283
    %285 = vmatmul.f32.gmra.mxu0 %v126
    %v286 = vpop.f32.mrf.mxu0
    %v287 = vadd.f32 0.0, %v286
    %288 = vmatmul.f32.gmra.mxu0 %v129
    %v289 = vpop.f32.mrf.mxu0
    %v290 = vadd.f32 0.0, %v289
    %291 = vmatmul.f32.gmra.mxu0 %v132
    %v292 = vpop.f32.mrf.mxu0
    %v293 = vadd.f32 0.0, %v292
    %294 = vmatmul.f32.gmra.mxu0 %v135
    %v295 = vpop.f32.mrf.mxu0
    %v296 = vadd.f32 0.0, %v295
    %297 = vmatmul.f32.gmra.mxu0 %v138
    %v298 = vpop.f32.mrf.mxu0
    %v299 = vadd.f32 0.0, %v298
    %300 = vmatmul.f32.gmra.mxu0 %v141
    %v301 = vpop.f32.mrf.mxu0
    %v302 = vadd.f32 0.0, %v301
    %303 = vmatmul.f32.gmra.mxu0 %v144
    %v304 = vpop.f32.mrf.mxu0
    %v305 = vadd.f32 0.0, %v304
    %306 = vmatmul.f32.gmra.mxu0 %v147
    %v307 = vpop.f32.mrf.mxu0
    %v308 = vadd.f32 0.0, %v307
    %309 = vmatmul.f32.gmra.mxu0 %v150
    %v310 = vpop.f32.mrf.mxu0
    %v311 = vadd.f32 0.0, %v310
    %312 = vmatmul.f32.gmra.mxu0 %v153
    %v313 = vpop.f32.mrf.mxu0
    %v314 = vadd.f32 0.0, %v313
    %315 = vmatmul.f32.gmra.mxu0 %v156
    %v316 = vpop.f32.mrf.mxu0
    %v317 = vadd.f32 0.0, %v316
    %318 = vmatmul.f32.gmra.mxu0 %v159
    %v319 = vpop.f32.mrf.mxu0
    %v320 = vadd.f32 0.0, %v319
    %321 = vmatmul.f32.gmra.mxu0 %v162
    %v322 = vpop.f32.mrf.mxu0
    %v323 = vadd.f32 0.0, %v322
    %324 = vdwg.mxu0
    %v325 = vld [vmem:[%s2] sm:$0x1]
    %v327 = vperm.slane %v325, 0
    %v329 = vsub.f32 %v327, %v230
    %v330 = vsub.f32 %v327, %v233
    %v331 = vsub.f32 %v327, %v236
    %v332 = vsub.f32 %v327, %v239
    %v333 = vsub.f32 %v327, %v242
    %v334 = vsub.f32 %v327, %v245
    %v335 = vsub.f32 %v327, %v248
    %v336 = vsub.f32 %v327, %v251
    %v337 = vsub.f32 %v327, %v254
    %v338 = vsub.f32 %v327, %v257
    %v339 = vsub.f32 %v327, %v260
    %v340 = vsub.f32 %v327, %v263
    %v341 = vsub.f32 %v327, %v266
    %v342 = vsub.f32 %v327, %v269
    %v343 = vsub.f32 %v327, %v272
    %v344 = vsub.f32 %v327, %v275
    %v345 = vsub.f32 %v327, %v278
    %v346 = vsub.f32 %v327, %v281
    %v347 = vsub.f32 %v327, %v284
    %v348 = vsub.f32 %v327, %v287
    %v349 = vsub.f32 %v327, %v290
    %v350 = vsub.f32 %v327, %v293
    %v351 = vsub.f32 %v327, %v296
    %v352 = vsub.f32 %v327, %v299
    %v353 = vsub.f32 %v327, %v302
    %v354 = vsub.f32 %v327, %v305
    %v355 = vsub.f32 %v327, %v308
    %v356 = vsub.f32 %v327, %v311
    %v357 = vsub.f32 %v327, %v314
    %v358 = vsub.f32 %v327, %v317
    %v359 = vsub.f32 %v327, %v320
    %v360 = vsub.f32 %v327, %v323
    %361 = vmin.xlane.f32.xlu0 %v329
    %v362 = vpop.xlane.xlu0 %361
    %363 = vmin.xlane.f32.xlu0 %v330
    %v364 = vpop.xlane.xlu0 %363
    %365 = vmin.xlane.f32.xlu0 %v331
    %v366 = vpop.xlane.xlu0 %365
    %367 = vmin.xlane.f32.xlu0 %v332
    %v368 = vpop.xlane.xlu0 %367
    %369 = vmin.xlane.f32.xlu0 %v333
    %v370 = vpop.xlane.xlu0 %369
    %371 = vmin.xlane.f32.xlu0 %v334
    %v372 = vpop.xlane.xlu0 %371
    %373 = vmin.xlane.f32.xlu0 %v335
    %v374 = vpop.xlane.xlu0 %373
    %375 = vmin.xlane.f32.xlu0 %v336
    %v376 = vpop.xlane.xlu0 %375
    %377 = vmin.xlane.f32.xlu0 %v337
    %v378 = vpop.xlane.xlu0 %377
    %379 = vmin.xlane.f32.xlu0 %v338
    %v380 = vpop.xlane.xlu0 %379
    %381 = vmin.xlane.f32.xlu0 %v339
    %v382 = vpop.xlane.xlu0 %381
    %383 = vmin.xlane.f32.xlu0 %v340
    %v384 = vpop.xlane.xlu0 %383
    %385 = vmin.xlane.f32.xlu0 %v341
    %v386 = vpop.xlane.xlu0 %385
    %387 = vmin.xlane.f32.xlu0 %v342
    %v388 = vpop.xlane.xlu0 %387
    %389 = vmin.xlane.f32.xlu0 %v343
    %v390 = vpop.xlane.xlu0 %389
    %391 = vmin.xlane.f32.xlu0 %v344
    %v392 = vpop.xlane.xlu0 %391
    %393 = vmin.xlane.f32.xlu0 %v345
    %v394 = vpop.xlane.xlu0 %393
    %395 = vmin.xlane.f32.xlu0 %v346
    %v396 = vpop.xlane.xlu0 %395
    %397 = vmin.xlane.f32.xlu0 %v347
    %v398 = vpop.xlane.xlu0 %397
    %399 = vmin.xlane.f32.xlu0 %v348
    %v400 = vpop.xlane.xlu0 %399
    %401 = vmin.xlane.f32.xlu0 %v349
    %v402 = vpop.xlane.xlu0 %401
    %403 = vmin.xlane.f32.xlu0 %v350
    %v404 = vpop.xlane.xlu0 %403
    %405 = vmin.xlane.f32.xlu0 %v351
    %v406 = vpop.xlane.xlu0 %405
    %407 = vmin.xlane.f32.xlu0 %v352
    %v408 = vpop.xlane.xlu0 %407
    %409 = vmin.xlane.f32.xlu0 %v353
    %v410 = vpop.xlane.xlu0 %409
    %411 = vmin.xlane.f32.xlu0 %v354
    %v412 = vpop.xlane.xlu0 %411
    %413 = vmin.xlane.f32.xlu0 %v355
    %v414 = vpop.xlane.xlu0 %413
    %415 = vmin.xlane.f32.xlu0 %v356
    %v416 = vpop.xlane.xlu0 %415
    %417 = vmin.xlane.f32.xlu0 %v357
    %v418 = vpop.xlane.xlu0 %417
    %419 = vmin.xlane.f32.xlu0 %v358
    %v420 = vpop.xlane.xlu0 %419
    %421 = vmin.xlane.f32.xlu0 %v359
    %v422 = vpop.xlane.xlu0 %421
    %423 = vmin.xlane.f32.xlu0 %v360
    %v424 = vpop.xlane.xlu0 %423
    %v425 = vlaneseq
    %v426 = vand.u32 %v425, 127
    %vm427 = vcmp.eq.f32.partialorder %v329, %v362
    %vm428 = vcmp.eq.f32.partialorder %v330, %v364
    %vm429 = vcmp.eq.f32.partialorder %v331, %v366
    %vm430 = vcmp.eq.f32.partialorder %v332, %v368
    %vm431 = vcmp.eq.f32.partialorder %v333, %v370
    %vm432 = vcmp.eq.f32.partialorder %v334, %v372
    %vm433 = vcmp.eq.f32.partialorder %v335, %v374
    %vm434 = vcmp.eq.f32.partialorder %v336, %v376
    %vm435 = vcmp.eq.f32.partialorder %v337, %v378
    %vm436 = vcmp.eq.f32.partialorder %v338, %v380
    %vm437 = vcmp.eq.f32.partialorder %v339, %v382
    %vm438 = vcmp.eq.f32.partialorder %v340, %v384
    %vm439 = vcmp.eq.f32.partialorder %v341, %v386
    %vm440 = vcmp.eq.f32.partialorder %v342, %v388
    %vm441 = vcmp.eq.f32.partialorder %v343, %v390
    %vm442 = vcmp.eq.f32.partialorder %v344, %v392
    %vm443 = vcmp.eq.f32.partialorder %v345, %v394
    %vm444 = vcmp.eq.f32.partialorder %v346, %v396
    %vm445 = vcmp.eq.f32.partialorder %v347, %v398
    %vm446 = vcmp.eq.f32.partialorder %v348, %v400
    %vm447 = vcmp.eq.f32.partialorder %v349, %v402
    %vm448 = vcmp.eq.f32.partialorder %v350, %v404
    %vm449 = vcmp.eq.f32.partialorder %v351, %v406
    %vm450 = vcmp.eq.f32.partialorder %v352, %v408
    %vm451 = vcmp.eq.f32.partialorder %v353, %v410
    %vm452 = vcmp.eq.f32.partialorder %v354, %v412
    %vm453 = vcmp.eq.f32.partialorder %v355, %v414
    %vm454 = vcmp.eq.f32.partialorder %v356, %v416
    %vm455 = vcmp.eq.f32.partialorder %v357, %v418
    %vm456 = vcmp.eq.f32.partialorder %v358, %v420
    %vm457 = vcmp.eq.f32.partialorder %v359, %v422
    %vm458 = vcmp.eq.f32.partialorder %v360, %v424
    %v459 = vsel %vm427, %v426, 128
    %v460 = vsel %vm428, %v426, 128
    %v461 = vsel %vm429, %v426, 128
    %v462 = vsel %vm430, %v426, 128
    %v463 = vsel %vm431, %v426, 128
    %v464 = vsel %vm432, %v426, 128
    %v465 = vsel %vm433, %v426, 128
    %v466 = vsel %vm434, %v426, 128
    %v467 = vsel %vm435, %v426, 128
    %v468 = vsel %vm436, %v426, 128
    %v469 = vsel %vm437, %v426, 128
    %v470 = vsel %vm438, %v426, 128
    %v471 = vsel %vm439, %v426, 128
    %v472 = vsel %vm440, %v426, 128
    %v473 = vsel %vm441, %v426, 128
    %v474 = vsel %vm442, %v426, 128
    %v475 = vsel %vm443, %v426, 128
    %v476 = vsel %vm444, %v426, 128
    %v477 = vsel %vm445, %v426, 128
    %v478 = vsel %vm446, %v426, 128
    %v479 = vsel %vm447, %v426, 128
    %v480 = vsel %vm448, %v426, 128
    %v481 = vsel %vm449, %v426, 128
    %v482 = vsel %vm450, %v426, 128
    %v483 = vsel %vm451, %v426, 128
    %v484 = vsel %vm452, %v426, 128
    %v485 = vsel %vm453, %v426, 128
    %v486 = vsel %vm454, %v426, 128
    %v487 = vsel %vm455, %v426, 128
    %v488 = vsel %vm456, %v426, 128
    %v489 = vsel %vm457, %v426, 128
    %v490 = vsel %vm458, %v426, 128
    %v491 = vand.u32 %v459, 65535
    %v492 = vshra.s32 %v459, 16
    %v493 = vcvt.s32.f32 %v491
    %v494 = vcvt.s32.f32 %v492
    %495 = vmin.xlane.f32.xlu0 %v494
    %v496 = vpop.xlane.xlu0 %495
    %vm497 = vcmp.eq.f32.partialorder %v494, %v496
    %v498 = vsel %vm497, %v493, inf
    %499 = vmin.xlane.f32.xlu0 %v498
    %v500 = vpop.xlane.xlu0 %499
    %v501 = vcvt.f32.s32 %v500
    %v502 = vcvt.f32.s32 %v496
    %v503 = vshll.u32 %v502, 16
    %v504 = vadd.s32 %v503, %v501
    %v505 = vand.u32 %v460, 65535
    %v506 = vshra.s32 %v460, 16
    %v507 = vcvt.s32.f32 %v505
    %v508 = vcvt.s32.f32 %v506
    %509 = vmin.xlane.f32.xlu0 %v508
    %v510 = vpop.xlane.xlu0 %509
    %vm511 = vcmp.eq.f32.partialorder %v508, %v510
    %v512 = vsel %vm511, %v507, inf
    %513 = vmin.xlane.f32.xlu0 %v512
    %v514 = vpop.xlane.xlu0 %513
    %v515 = vcvt.f32.s32 %v514
    %v516 = vcvt.f32.s32 %v510
    %v517 = vshll.u32 %v516, 16
    %v518 = vadd.s32 %v517, %v515
    %v519 = vand.u32 %v461, 65535
    %v520 = vshra.s32 %v461, 16
    %v521 = vcvt.s32.f32 %v519
    %v522 = vcvt.s32.f32 %v520
    %523 = vmin.xlane.f32.xlu0 %v522
    %v524 = vpop.xlane.xlu0 %523
    %vm525 = vcmp.eq.f32.partialorder %v522, %v524
    %v526 = vsel %vm525, %v521, inf
    %527 = vmin.xlane.f32.xlu0 %v526
    %v528 = vpop.xlane.xlu0 %527
    %v529 = vcvt.f32.s32 %v528
    %v530 = vcvt.f32.s32 %v524
    %v531 = vshll.u32 %v530, 16
    %v532 = vadd.s32 %v531, %v529
    %v533 = vand.u32 %v462, 65535
    %v534 = vshra.s32 %v462, 16
    %v535 = vcvt.s32.f32 %v533
    %v536 = vcvt.s32.f32 %v534
    %537 = vmin.xlane.f32.xlu0 %v536
    %v538 = vpop.xlane.xlu0 %537
    %vm539 = vcmp.eq.f32.partialorder %v536, %v538
    %v540 = vsel %vm539, %v535, inf
    %541 = vmin.xlane.f32.xlu0 %v540
    %v542 = vpop.xlane.xlu0 %541
    %v543 = vcvt.f32.s32 %v542
    %v544 = vcvt.f32.s32 %v538
    %v545 = vshll.u32 %v544, 16
    %v546 = vadd.s32 %v545, %v543
    %v547 = vand.u32 %v463, 65535
    %v548 = vshra.s32 %v463, 16
    %v549 = vcvt.s32.f32 %v547
    %v550 = vcvt.s32.f32 %v548
    %551 = vmin.xlane.f32.xlu0 %v550
    %v552 = vpop.xlane.xlu0 %551
    %vm553 = vcmp.eq.f32.partialorder %v550, %v552
    %v554 = vsel %vm553, %v549, inf
    %555 = vmin.xlane.f32.xlu0 %v554
    %v556 = vpop.xlane.xlu0 %555
    %v557 = vcvt.f32.s32 %v556
    %v558 = vcvt.f32.s32 %v552
    %v559 = vshll.u32 %v558, 16
    %v560 = vadd.s32 %v559, %v557
    %v561 = vand.u32 %v464, 65535
    %v562 = vshra.s32 %v464, 16
    %v563 = vcvt.s32.f32 %v561
    %v564 = vcvt.s32.f32 %v562
    %565 = vmin.xlane.f32.xlu0 %v564
    %v566 = vpop.xlane.xlu0 %565
    %vm567 = vcmp.eq.f32.partialorder %v564, %v566
    %v568 = vsel %vm567, %v563, inf
    %569 = vmin.xlane.f32.xlu0 %v568
    %v570 = vpop.xlane.xlu0 %569
    %v571 = vcvt.f32.s32 %v570
    %v572 = vcvt.f32.s32 %v566
    %v573 = vshll.u32 %v572, 16
    %v574 = vadd.s32 %v573, %v571
    %v575 = vand.u32 %v465, 65535
    %v576 = vshra.s32 %v465, 16
    %v577 = vcvt.s32.f32 %v575
    %v578 = vcvt.s32.f32 %v576
    %579 = vmin.xlane.f32.xlu0 %v578
    %v580 = vpop.xlane.xlu0 %579
    %vm581 = vcmp.eq.f32.partialorder %v578, %v580
    %v582 = vsel %vm581, %v577, inf
    %583 = vmin.xlane.f32.xlu0 %v582
    %v584 = vpop.xlane.xlu0 %583
    %v585 = vcvt.f32.s32 %v584
    %v586 = vcvt.f32.s32 %v580
    %v587 = vshll.u32 %v586, 16
    %v588 = vadd.s32 %v587, %v585
    %v589 = vand.u32 %v466, 65535
    %v590 = vshra.s32 %v466, 16
    %v591 = vcvt.s32.f32 %v589
    %v592 = vcvt.s32.f32 %v590
    %593 = vmin.xlane.f32.xlu0 %v592
    %v594 = vpop.xlane.xlu0 %593
    %vm595 = vcmp.eq.f32.partialorder %v592, %v594
    %v596 = vsel %vm595, %v591, inf
    %597 = vmin.xlane.f32.xlu0 %v596
    %v598 = vpop.xlane.xlu0 %597
    %v599 = vcvt.f32.s32 %v598
    %v600 = vcvt.f32.s32 %v594
    %v601 = vshll.u32 %v600, 16
    %v602 = vadd.s32 %v601, %v599
    %v603 = vand.u32 %v467, 65535
    %v604 = vshra.s32 %v467, 16
    %v605 = vcvt.s32.f32 %v603
    %v606 = vcvt.s32.f32 %v604
    %607 = vmin.xlane.f32.xlu0 %v606
    %v608 = vpop.xlane.xlu0 %607
    %vm609 = vcmp.eq.f32.partialorder %v606, %v608
    %v610 = vsel %vm609, %v605, inf
    %611 = vmin.xlane.f32.xlu0 %v610
    %v612 = vpop.xlane.xlu0 %611
    %v613 = vcvt.f32.s32 %v612
    %v614 = vcvt.f32.s32 %v608
    %v615 = vshll.u32 %v614, 16
    %v616 = vadd.s32 %v615, %v613
    %v617 = vand.u32 %v468, 65535
    %v618 = vshra.s32 %v468, 16
    %v619 = vcvt.s32.f32 %v617
    %v620 = vcvt.s32.f32 %v618
    %621 = vmin.xlane.f32.xlu0 %v620
    %v622 = vpop.xlane.xlu0 %621
    %vm623 = vcmp.eq.f32.partialorder %v620, %v622
    %v624 = vsel %vm623, %v619, inf
    %625 = vmin.xlane.f32.xlu0 %v624
    %v626 = vpop.xlane.xlu0 %625
    %v627 = vcvt.f32.s32 %v626
    %v628 = vcvt.f32.s32 %v622
    %v629 = vshll.u32 %v628, 16
    %v630 = vadd.s32 %v629, %v627
    %v631 = vand.u32 %v469, 65535
    %v632 = vshra.s32 %v469, 16
    %v633 = vcvt.s32.f32 %v631
    %v634 = vcvt.s32.f32 %v632
    %635 = vmin.xlane.f32.xlu0 %v634
    %v636 = vpop.xlane.xlu0 %635
    %vm637 = vcmp.eq.f32.partialorder %v634, %v636
    %v638 = vsel %vm637, %v633, inf
    %639 = vmin.xlane.f32.xlu0 %v638
    %v640 = vpop.xlane.xlu0 %639
    %v641 = vcvt.f32.s32 %v640
    %v642 = vcvt.f32.s32 %v636
    %v643 = vshll.u32 %v642, 16
    %v644 = vadd.s32 %v643, %v641
    %v645 = vand.u32 %v470, 65535
    %v646 = vshra.s32 %v470, 16
    %v647 = vcvt.s32.f32 %v645
    %v648 = vcvt.s32.f32 %v646
    %649 = vmin.xlane.f32.xlu0 %v648
    %v650 = vpop.xlane.xlu0 %649
    %vm651 = vcmp.eq.f32.partialorder %v648, %v650
    %v652 = vsel %vm651, %v647, inf
    %653 = vmin.xlane.f32.xlu0 %v652
    %v654 = vpop.xlane.xlu0 %653
    %v655 = vcvt.f32.s32 %v654
    %v656 = vcvt.f32.s32 %v650
    %v657 = vshll.u32 %v656, 16
    %v658 = vadd.s32 %v657, %v655
    %v659 = vand.u32 %v471, 65535
    %v660 = vshra.s32 %v471, 16
    %v661 = vcvt.s32.f32 %v659
    %v662 = vcvt.s32.f32 %v660
    %663 = vmin.xlane.f32.xlu0 %v662
    %v664 = vpop.xlane.xlu0 %663
    %vm665 = vcmp.eq.f32.partialorder %v662, %v664
    %v666 = vsel %vm665, %v661, inf
    %667 = vmin.xlane.f32.xlu0 %v666
    %v668 = vpop.xlane.xlu0 %667
    %v669 = vcvt.f32.s32 %v668
    %v670 = vcvt.f32.s32 %v664
    %v671 = vshll.u32 %v670, 16
    %v672 = vadd.s32 %v671, %v669
    %v673 = vand.u32 %v472, 65535
    %v674 = vshra.s32 %v472, 16
    %v675 = vcvt.s32.f32 %v673
    %v676 = vcvt.s32.f32 %v674
    %677 = vmin.xlane.f32.xlu0 %v676
    %v678 = vpop.xlane.xlu0 %677
    %vm679 = vcmp.eq.f32.partialorder %v676, %v678
    %v680 = vsel %vm679, %v675, inf
    %681 = vmin.xlane.f32.xlu0 %v680
    %v682 = vpop.xlane.xlu0 %681
    %v683 = vcvt.f32.s32 %v682
    %v684 = vcvt.f32.s32 %v678
    %v685 = vshll.u32 %v684, 16
    %v686 = vadd.s32 %v685, %v683
    %v687 = vand.u32 %v473, 65535
    %v688 = vshra.s32 %v473, 16
    %v689 = vcvt.s32.f32 %v687
    %v690 = vcvt.s32.f32 %v688
    %691 = vmin.xlane.f32.xlu0 %v690
    %v692 = vpop.xlane.xlu0 %691
    %vm693 = vcmp.eq.f32.partialorder %v690, %v692
    %v694 = vsel %vm693, %v689, inf
    %695 = vmin.xlane.f32.xlu0 %v694
    %v696 = vpop.xlane.xlu0 %695
    %v697 = vcvt.f32.s32 %v696
    %v698 = vcvt.f32.s32 %v692
    %v699 = vshll.u32 %v698, 16
    %v700 = vadd.s32 %v699, %v697
    %v701 = vand.u32 %v474, 65535
    %v702 = vshra.s32 %v474, 16
    %v703 = vcvt.s32.f32 %v701
    %v704 = vcvt.s32.f32 %v702
    %705 = vmin.xlane.f32.xlu0 %v704
    %v706 = vpop.xlane.xlu0 %705
    %vm707 = vcmp.eq.f32.partialorder %v704, %v706
    %v708 = vsel %vm707, %v703, inf
    %709 = vmin.xlane.f32.xlu0 %v708
    %v710 = vpop.xlane.xlu0 %709
    %v711 = vcvt.f32.s32 %v710
    %v712 = vcvt.f32.s32 %v706
    %v713 = vshll.u32 %v712, 16
    %v714 = vadd.s32 %v713, %v711
    %v715 = vand.u32 %v475, 65535
    %v716 = vshra.s32 %v475, 16
    %v717 = vcvt.s32.f32 %v715
    %v718 = vcvt.s32.f32 %v716
    %719 = vmin.xlane.f32.xlu0 %v718
    %v720 = vpop.xlane.xlu0 %719
    %vm721 = vcmp.eq.f32.partialorder %v718, %v720
    %v722 = vsel %vm721, %v717, inf
    %723 = vmin.xlane.f32.xlu0 %v722
    %v724 = vpop.xlane.xlu0 %723
    %v725 = vcvt.f32.s32 %v724
    %v726 = vcvt.f32.s32 %v720
    %v727 = vshll.u32 %v726, 16
    %v728 = vadd.s32 %v727, %v725
    %v729 = vand.u32 %v476, 65535
    %v730 = vshra.s32 %v476, 16
    %v731 = vcvt.s32.f32 %v729
    %v732 = vcvt.s32.f32 %v730
    %733 = vmin.xlane.f32.xlu0 %v732
    %v734 = vpop.xlane.xlu0 %733
    %vm735 = vcmp.eq.f32.partialorder %v732, %v734
    %v736 = vsel %vm735, %v731, inf
    %737 = vmin.xlane.f32.xlu0 %v736
    %v738 = vpop.xlane.xlu0 %737
    %v739 = vcvt.f32.s32 %v738
    %v740 = vcvt.f32.s32 %v734
    %v741 = vshll.u32 %v740, 16
    %v742 = vadd.s32 %v741, %v739
    %v743 = vand.u32 %v477, 65535
    %v744 = vshra.s32 %v477, 16
    %v745 = vcvt.s32.f32 %v743
    %v746 = vcvt.s32.f32 %v744
    %747 = vmin.xlane.f32.xlu0 %v746
    %v748 = vpop.xlane.xlu0 %747
    %vm749 = vcmp.eq.f32.partialorder %v746, %v748
    %v750 = vsel %vm749, %v745, inf
    %751 = vmin.xlane.f32.xlu0 %v750
    %v752 = vpop.xlane.xlu0 %751
    %v753 = vcvt.f32.s32 %v752
    %v754 = vcvt.f32.s32 %v748
    %v755 = vshll.u32 %v754, 16
    %v756 = vadd.s32 %v755, %v753
    %v757 = vand.u32 %v478, 65535
    %v758 = vshra.s32 %v478, 16
    %v759 = vcvt.s32.f32 %v757
    %v760 = vcvt.s32.f32 %v758
    %761 = vmin.xlane.f32.xlu0 %v760
    %v762 = vpop.xlane.xlu0 %761
    %vm763 = vcmp.eq.f32.partialorder %v760, %v762
    %v764 = vsel %vm763, %v759, inf
    %765 = vmin.xlane.f32.xlu0 %v764
    %v766 = vpop.xlane.xlu0 %765
    %v767 = vcvt.f32.s32 %v766
    %v768 = vcvt.f32.s32 %v762
    %v769 = vshll.u32 %v768, 16
    %v770 = vadd.s32 %v769, %v767
    %v771 = vand.u32 %v479, 65535
    %v772 = vshra.s32 %v479, 16
    %v773 = vcvt.s32.f32 %v771
    %v774 = vcvt.s32.f32 %v772
    %775 = vmin.xlane.f32.xlu0 %v774
    %v776 = vpop.xlane.xlu0 %775
    %vm777 = vcmp.eq.f32.partialorder %v774, %v776
    %v778 = vsel %vm777, %v773, inf
    %779 = vmin.xlane.f32.xlu0 %v778
    %v780 = vpop.xlane.xlu0 %779
    %v781 = vcvt.f32.s32 %v780
    %v782 = vcvt.f32.s32 %v776
    %v783 = vshll.u32 %v782, 16
    %v784 = vadd.s32 %v783, %v781
    %v785 = vand.u32 %v480, 65535
    %v786 = vshra.s32 %v480, 16
    %v787 = vcvt.s32.f32 %v785
    %v788 = vcvt.s32.f32 %v786
    %789 = vmin.xlane.f32.xlu0 %v788
    %v790 = vpop.xlane.xlu0 %789
    %vm791 = vcmp.eq.f32.partialorder %v788, %v790
    %v792 = vsel %vm791, %v787, inf
    %793 = vmin.xlane.f32.xlu0 %v792
    %v794 = vpop.xlane.xlu0 %793
    %v795 = vcvt.f32.s32 %v794
    %v796 = vcvt.f32.s32 %v790
    %v797 = vshll.u32 %v796, 16
    %v798 = vadd.s32 %v797, %v795
    %v799 = vand.u32 %v481, 65535
    %v800 = vshra.s32 %v481, 16
    %v801 = vcvt.s32.f32 %v799
    %v802 = vcvt.s32.f32 %v800
    %803 = vmin.xlane.f32.xlu0 %v802
    %v804 = vpop.xlane.xlu0 %803
    %vm805 = vcmp.eq.f32.partialorder %v802, %v804
    %v806 = vsel %vm805, %v801, inf
    %807 = vmin.xlane.f32.xlu0 %v806
    %v808 = vpop.xlane.xlu0 %807
    %v809 = vcvt.f32.s32 %v808
    %v810 = vcvt.f32.s32 %v804
    %v811 = vshll.u32 %v810, 16
    %v812 = vadd.s32 %v811, %v809
    %v813 = vand.u32 %v482, 65535
    %v814 = vshra.s32 %v482, 16
    %v815 = vcvt.s32.f32 %v813
    %v816 = vcvt.s32.f32 %v814
    %817 = vmin.xlane.f32.xlu0 %v816
    %v818 = vpop.xlane.xlu0 %817
    %vm819 = vcmp.eq.f32.partialorder %v816, %v818
    %v820 = vsel %vm819, %v815, inf
    %821 = vmin.xlane.f32.xlu0 %v820
    %v822 = vpop.xlane.xlu0 %821
    %v823 = vcvt.f32.s32 %v822
    %v824 = vcvt.f32.s32 %v818
    %v825 = vshll.u32 %v824, 16
    %v826 = vadd.s32 %v825, %v823
    %v827 = vand.u32 %v483, 65535
    %v828 = vshra.s32 %v483, 16
    %v829 = vcvt.s32.f32 %v827
    %v830 = vcvt.s32.f32 %v828
    %831 = vmin.xlane.f32.xlu0 %v830
    %v832 = vpop.xlane.xlu0 %831
    %vm833 = vcmp.eq.f32.partialorder %v830, %v832
    %v834 = vsel %vm833, %v829, inf
    %835 = vmin.xlane.f32.xlu0 %v834
    %v836 = vpop.xlane.xlu0 %835
    %v837 = vcvt.f32.s32 %v836
    %v838 = vcvt.f32.s32 %v832
    %v839 = vshll.u32 %v838, 16
    %v840 = vadd.s32 %v839, %v837
    %v841 = vand.u32 %v484, 65535
    %v842 = vshra.s32 %v484, 16
    %v843 = vcvt.s32.f32 %v841
    %v844 = vcvt.s32.f32 %v842
    %845 = vmin.xlane.f32.xlu0 %v844
    %v846 = vpop.xlane.xlu0 %845
    %vm847 = vcmp.eq.f32.partialorder %v844, %v846
    %v848 = vsel %vm847, %v843, inf
    %849 = vmin.xlane.f32.xlu0 %v848
    %v850 = vpop.xlane.xlu0 %849
    %v851 = vcvt.f32.s32 %v850
    %v852 = vcvt.f32.s32 %v846
    %v853 = vshll.u32 %v852, 16
    %v854 = vadd.s32 %v853, %v851
    %v855 = vand.u32 %v485, 65535
    %v856 = vshra.s32 %v485, 16
    %v857 = vcvt.s32.f32 %v855
    %v858 = vcvt.s32.f32 %v856
    %859 = vmin.xlane.f32.xlu0 %v858
    %v860 = vpop.xlane.xlu0 %859
    %vm861 = vcmp.eq.f32.partialorder %v858, %v860
    %v862 = vsel %vm861, %v857, inf
    %863 = vmin.xlane.f32.xlu0 %v862
    %v864 = vpop.xlane.xlu0 %863
    %v865 = vcvt.f32.s32 %v864
    %v866 = vcvt.f32.s32 %v860
    %v867 = vshll.u32 %v866, 16
    %v868 = vadd.s32 %v867, %v865
    %v869 = vand.u32 %v486, 65535
    %v870 = vshra.s32 %v486, 16
    %v871 = vcvt.s32.f32 %v869
    %v872 = vcvt.s32.f32 %v870
    %873 = vmin.xlane.f32.xlu0 %v872
    %v874 = vpop.xlane.xlu0 %873
    %vm875 = vcmp.eq.f32.partialorder %v872, %v874
    %v876 = vsel %vm875, %v871, inf
    %877 = vmin.xlane.f32.xlu0 %v876
    %v878 = vpop.xlane.xlu0 %877
    %v879 = vcvt.f32.s32 %v878
    %v880 = vcvt.f32.s32 %v874
    %v881 = vshll.u32 %v880, 16
    %v882 = vadd.s32 %v881, %v879
    %v883 = vand.u32 %v487, 65535
    %v884 = vshra.s32 %v487, 16
    %v885 = vcvt.s32.f32 %v883
    %v886 = vcvt.s32.f32 %v884
    %887 = vmin.xlane.f32.xlu0 %v886
    %v888 = vpop.xlane.xlu0 %887
    %vm889 = vcmp.eq.f32.partialorder %v886, %v888
    %v890 = vsel %vm889, %v885, inf
    %891 = vmin.xlane.f32.xlu0 %v890
    %v892 = vpop.xlane.xlu0 %891
    %v893 = vcvt.f32.s32 %v892
    %v894 = vcvt.f32.s32 %v888
    %v895 = vshll.u32 %v894, 16
    %v896 = vadd.s32 %v895, %v893
    %v897 = vand.u32 %v488, 65535
    %v898 = vshra.s32 %v488, 16
    %v899 = vcvt.s32.f32 %v897
    %v900 = vcvt.s32.f32 %v898
    %901 = vmin.xlane.f32.xlu0 %v900
    %v902 = vpop.xlane.xlu0 %901
    %vm903 = vcmp.eq.f32.partialorder %v900, %v902
    %v904 = vsel %vm903, %v899, inf
    %905 = vmin.xlane.f32.xlu0 %v904
    %v906 = vpop.xlane.xlu0 %905
    %v907 = vcvt.f32.s32 %v906
    %v908 = vcvt.f32.s32 %v902
    %v909 = vshll.u32 %v908, 16
    %v910 = vadd.s32 %v909, %v907
    %v911 = vand.u32 %v489, 65535
    %v912 = vshra.s32 %v489, 16
    %v913 = vcvt.s32.f32 %v911
    %v914 = vcvt.s32.f32 %v912
    %915 = vmin.xlane.f32.xlu0 %v914
    %v916 = vpop.xlane.xlu0 %915
    %vm917 = vcmp.eq.f32.partialorder %v914, %v916
    %v918 = vsel %vm917, %v913, inf
    %919 = vmin.xlane.f32.xlu0 %v918
    %v920 = vpop.xlane.xlu0 %919
    %v921 = vcvt.f32.s32 %v920
    %v922 = vcvt.f32.s32 %v916
    %v923 = vshll.u32 %v922, 16
    %v924 = vadd.s32 %v923, %v921
    %v925 = vand.u32 %v490, 65535
    %v926 = vshra.s32 %v490, 16
    %v927 = vcvt.s32.f32 %v925
    %v928 = vcvt.s32.f32 %v926
    %929 = vmin.xlane.f32.xlu0 %v928
    %v930 = vpop.xlane.xlu0 %929
    %vm931 = vcmp.eq.f32.partialorder %v928, %v930
    %v932 = vsel %vm931, %v927, inf
    %933 = vmin.xlane.f32.xlu0 %v932
    %v934 = vpop.xlane.xlu0 %933
    %v935 = vcvt.f32.s32 %v934
    %v936 = vcvt.f32.s32 %v930
    %v937 = vshll.u32 %v936, 16
    %v938 = vadd.s32 %v937, %v935
    %vm939 = vcmp.eq.s32.totalorder %v426, %v504
    %vm940 = vcmp.eq.s32.totalorder %v426, %v518
    %vm941 = vcmp.eq.s32.totalorder %v426, %v532
    %vm942 = vcmp.eq.s32.totalorder %v426, %v546
    %vm943 = vcmp.eq.s32.totalorder %v426, %v560
    %vm944 = vcmp.eq.s32.totalorder %v426, %v574
    %vm945 = vcmp.eq.s32.totalorder %v426, %v588
    %vm946 = vcmp.eq.s32.totalorder %v426, %v602
    %vm947 = vcmp.eq.s32.totalorder %v426, %v616
    %vm948 = vcmp.eq.s32.totalorder %v426, %v630
    %vm949 = vcmp.eq.s32.totalorder %v426, %v644
    %vm950 = vcmp.eq.s32.totalorder %v426, %v658
    %vm951 = vcmp.eq.s32.totalorder %v426, %v672
    %vm952 = vcmp.eq.s32.totalorder %v426, %v686
    %vm953 = vcmp.eq.s32.totalorder %v426, %v700
    %vm954 = vcmp.eq.s32.totalorder %v426, %v714
    %vm955 = vcmp.eq.s32.totalorder %v426, %v728
    %vm956 = vcmp.eq.s32.totalorder %v426, %v742
    %vm957 = vcmp.eq.s32.totalorder %v426, %v756
    %vm958 = vcmp.eq.s32.totalorder %v426, %v770
    %vm959 = vcmp.eq.s32.totalorder %v426, %v784
    %vm960 = vcmp.eq.s32.totalorder %v426, %v798
    %vm961 = vcmp.eq.s32.totalorder %v426, %v812
    %vm962 = vcmp.eq.s32.totalorder %v426, %v826
    %vm963 = vcmp.eq.s32.totalorder %v426, %v840
    %vm964 = vcmp.eq.s32.totalorder %v426, %v854
    %vm965 = vcmp.eq.s32.totalorder %v426, %v868
    %vm966 = vcmp.eq.s32.totalorder %v426, %v882
    %vm967 = vcmp.eq.s32.totalorder %v426, %v896
    %vm968 = vcmp.eq.s32.totalorder %v426, %v910
    %vm969 = vcmp.eq.s32.totalorder %v426, %v924
    %vm970 = vcmp.eq.s32.totalorder %v426, %v938
    %v971 = vsel %vm939, 1, 0
    %v972 = vsel %vm940, 1, 0
    %v973 = vsel %vm941, 1, 0
    %v974 = vsel %vm942, 1, 0
    %v975 = vsel %vm943, 1, 0
    %v976 = vsel %vm944, 1, 0
    %v977 = vsel %vm945, 1, 0
    %v978 = vsel %vm946, 1, 0
    %v979 = vsel %vm947, 1, 0
    %v980 = vsel %vm948, 1, 0
    %v981 = vsel %vm949, 1, 0
    %v982 = vsel %vm950, 1, 0
    %v983 = vsel %vm951, 1, 0
    %v984 = vsel %vm952, 1, 0
    %v985 = vsel %vm953, 1, 0
    %v986 = vsel %vm954, 1, 0
    %v987 = vsel %vm955, 1, 0
    %v988 = vsel %vm956, 1, 0
    %v989 = vsel %vm957, 1, 0
    %v990 = vsel %vm958, 1, 0
    %v991 = vsel %vm959, 1, 0
    %v992 = vsel %vm960, 1, 0
    %v993 = vsel %vm961, 1, 0
    %v994 = vsel %vm962, 1, 0
    %v995 = vsel %vm963, 1, 0
    %v996 = vsel %vm964, 1, 0
    %v997 = vsel %vm965, 1, 0
    %v998 = vsel %vm966, 1, 0
    %v999 = vsel %vm967, 1, 0
    %v1000 = vsel %vm968, 1, 0
    %v1001 = vsel %vm969, 1, 0
    %v1002 = vsel %vm970, 1, 0
    %v1003 = vcvt.s32.f32 %v971
    %v1004 = vcvt.s32.f32 %v972
    %v1005 = vcvt.s32.f32 %v973
    %v1006 = vcvt.s32.f32 %v974
    %v1007 = vcvt.s32.f32 %v975
    %v1008 = vcvt.s32.f32 %v976
    %v1009 = vcvt.s32.f32 %v977
    %v1010 = vcvt.s32.f32 %v978
    %v1011 = vcvt.s32.f32 %v979
    %v1012 = vcvt.s32.f32 %v980
    %v1013 = vcvt.s32.f32 %v981
    %v1014 = vcvt.s32.f32 %v982
    %v1015 = vcvt.s32.f32 %v983
    %v1016 = vcvt.s32.f32 %v984
    %v1017 = vcvt.s32.f32 %v985
    %v1018 = vcvt.s32.f32 %v986
    %v1019 = vcvt.s32.f32 %v987
    %v1020 = vcvt.s32.f32 %v988
    %v1021 = vcvt.s32.f32 %v989
    %v1022 = vcvt.s32.f32 %v990
    %v1023 = vcvt.s32.f32 %v991
    %v1024 = vcvt.s32.f32 %v992
    %v1025 = vcvt.s32.f32 %v993
    %v1026 = vcvt.s32.f32 %v994
    %v1027 = vcvt.s32.f32 %v995
    %v1028 = vcvt.s32.f32 %v996
    %v1029 = vcvt.s32.f32 %v997
    %v1030 = vcvt.s32.f32 %v998
    %v1031 = vcvt.s32.f32 %v999
    %v1032 = vcvt.s32.f32 %v1000
    %v1033 = vcvt.s32.f32 %v1001
    %v1034 = vcvt.s32.f32 %v1002
    %1035 = vmatpush.msra.mxu0 %v66
    %1036 = vmatpush.msra.mxu0 %v65
    %1037 = vmatpush.msra.mxu0 %v64
    %1038 = vmatpush.msra.mxu0 %v63
    %1039 = vmatpush.msra.mxu0 %v62
    %1040 = vmatpush.msra.mxu0 %v61
    %1041 = vmatpush.msra.mxu0 %v60
    %1042 = vmatpush.msra.mxu0 %v59
    %1043 = vmatpush.msra.mxu0 %v58
    %1044 = vmatpush.msra.mxu0 %v57
    %1045 = vmatpush.msra.mxu0 %v56
    %1046 = vmatpush.msra.mxu0 %v55
    %1047 = vmatpush.msra.mxu0 %v54
    %1048 = vmatpush.msra.mxu0 %v53
    %1049 = vmatpush.msra.mxu0 %v52
    %1050 = vmatpush.msra.mxu0 %v51
    %1051 = vmatmul.f32.gmra.mxu0 %v1003
    %v1052 = vpop.f32.mrf.mxu0
    %v1053 = vadd.f32 0.0, %v1052
    %1054 = vmatmul.f32.gmra.mxu0 %v1004
    %v1055 = vpop.f32.mrf.mxu0
    %v1056 = vadd.f32 0.0, %v1055
    %1057 = vmatmul.f32.gmra.mxu0 %v1005
    %v1058 = vpop.f32.mrf.mxu0
    %v1059 = vadd.f32 0.0, %v1058
    %1060 = vmatmul.f32.gmra.mxu0 %v1006
    %v1061 = vpop.f32.mrf.mxu0
    %v1062 = vadd.f32 0.0, %v1061
    %1063 = vmatmul.f32.gmra.mxu0 %v1007
    %v1064 = vpop.f32.mrf.mxu0
    %v1065 = vadd.f32 0.0, %v1064
    %1066 = vmatmul.f32.gmra.mxu0 %v1008
    %v1067 = vpop.f32.mrf.mxu0
    %v1068 = vadd.f32 0.0, %v1067
    %1069 = vmatmul.f32.gmra.mxu0 %v1009
    %v1070 = vpop.f32.mrf.mxu0
    %v1071 = vadd.f32 0.0, %v1070
    %1072 = vmatmul.f32.gmra.mxu0 %v1010
    %v1073 = vpop.f32.mrf.mxu0
    %v1074 = vadd.f32 0.0, %v1073
    %1075 = vmatmul.f32.gmra.mxu0 %v1011
    %v1076 = vpop.f32.mrf.mxu0
    %v1077 = vadd.f32 0.0, %v1076
    %1078 = vmatmul.f32.gmra.mxu0 %v1012
    %v1079 = vpop.f32.mrf.mxu0
    %v1080 = vadd.f32 0.0, %v1079
    %1081 = vmatmul.f32.gmra.mxu0 %v1013
    %v1082 = vpop.f32.mrf.mxu0
    %v1083 = vadd.f32 0.0, %v1082
    %1084 = vmatmul.f32.gmra.mxu0 %v1014
    %v1085 = vpop.f32.mrf.mxu0
    %v1086 = vadd.f32 0.0, %v1085
    %1087 = vmatmul.f32.gmra.mxu0 %v1015
    %v1088 = vpop.f32.mrf.mxu0
    %v1089 = vadd.f32 0.0, %v1088
    %1090 = vmatmul.f32.gmra.mxu0 %v1016
    %v1091 = vpop.f32.mrf.mxu0
    %v1092 = vadd.f32 0.0, %v1091
    %1093 = vmatmul.f32.gmra.mxu0 %v1017
    %v1094 = vpop.f32.mrf.mxu0
    %v1095 = vadd.f32 0.0, %v1094
    %1096 = vmatmul.f32.gmra.mxu0 %v1018
    %v1097 = vpop.f32.mrf.mxu0
    %v1098 = vadd.f32 0.0, %v1097
    %1099 = vmatmul.f32.gmra.mxu0 %v1019
    %v1100 = vpop.f32.mrf.mxu0
    %v1101 = vadd.f32 0.0, %v1100
    %1102 = vmatmul.f32.gmra.mxu0 %v1020
    %v1103 = vpop.f32.mrf.mxu0
    %v1104 = vadd.f32 0.0, %v1103
    %1105 = vmatmul.f32.gmra.mxu0 %v1021
    %v1106 = vpop.f32.mrf.mxu0
    %v1107 = vadd.f32 0.0, %v1106
    %1108 = vmatmul.f32.gmra.mxu0 %v1022
    %v1109 = vpop.f32.mrf.mxu0
    %v1110 = vadd.f32 0.0, %v1109
    %1111 = vmatmul.f32.gmra.mxu0 %v1023
    %v1112 = vpop.f32.mrf.mxu0
    %v1113 = vadd.f32 0.0, %v1112
    %1114 = vmatmul.f32.gmra.mxu0 %v1024
    %v1115 = vpop.f32.mrf.mxu0
    %v1116 = vadd.f32 0.0, %v1115
    %1117 = vmatmul.f32.gmra.mxu0 %v1025
    %v1118 = vpop.f32.mrf.mxu0
    %v1119 = vadd.f32 0.0, %v1118
    %1120 = vmatmul.f32.gmra.mxu0 %v1026
    %v1121 = vpop.f32.mrf.mxu0
    %v1122 = vadd.f32 0.0, %v1121
    %1123 = vmatmul.f32.gmra.mxu0 %v1027
    %v1124 = vpop.f32.mrf.mxu0
    %v1125 = vadd.f32 0.0, %v1124
    %1126 = vmatmul.f32.gmra.mxu0 %v1028
    %v1127 = vpop.f32.mrf.mxu0
    %v1128 = vadd.f32 0.0, %v1127
    %1129 = vmatmul.f32.gmra.mxu0 %v1029
    %v1130 = vpop.f32.mrf.mxu0
    %v1131 = vadd.f32 0.0, %v1130
    %1132 = vmatmul.f32.gmra.mxu0 %v1030
    %v1133 = vpop.f32.mrf.mxu0
    %v1134 = vadd.f32 0.0, %v1133
    %1135 = vmatmul.f32.gmra.mxu0 %v1031
    %v1136 = vpop.f32.mrf.mxu0
    %v1137 = vadd.f32 0.0, %v1136
    %1138 = vmatmul.f32.gmra.mxu0 %v1032
    %v1139 = vpop.f32.mrf.mxu0
    %v1140 = vadd.f32 0.0, %v1139
    %1141 = vmatmul.f32.gmra.mxu0 %v1033
    %v1142 = vpop.f32.mrf.mxu0
    %v1143 = vadd.f32 0.0, %v1142
    %1144 = vmatmul.f32.gmra.mxu0 %v1034
    %v1145 = vpop.f32.mrf.mxu0
    %v1146 = vadd.f32 0.0, %v1145
    %1147 = vdwg.mxu0
    %1148 = vst.msk [vmem:[%s3] sm:$0xff] %vm67, %v1053
    %1149 = vst.msk [vmem:[%s3 + $0x8] sm:$0xff] %vm67, %v1056
    %1150 = vst.msk [vmem:[%s3 + $0x10] sm:$0xff] %vm67, %v1059
    %1151 = vst.msk [vmem:[%s3 + $0x18] sm:$0xff] %vm67, %v1062
    %1152 = vst.msk [vmem:[%s3 + $0x20] sm:$0xff] %vm67, %v1065
    %1153 = vst.msk [vmem:[%s3 + $0x28] sm:$0xff] %vm67, %v1068
    %1154 = vst.msk [vmem:[%s3 + $0x30] sm:$0xff] %vm67, %v1071
    %1155 = vst.msk [vmem:[%s3 + $0x38] sm:$0xff] %vm67, %v1074
    %1156 = vst.msk [vmem:[%s3 + $0x40] sm:$0xff] %vm67, %v1077
    %1157 = vst.msk [vmem:[%s3 + $0x48] sm:$0xff] %vm67, %v1080
    %1158 = vst.msk [vmem:[%s3 + $0x50] sm:$0xff] %vm67, %v1083
    %1159 = vst.msk [vmem:[%s3 + $0x58] sm:$0xff] %vm67, %v1086
    %1160 = vst.msk [vmem:[%s3 + $0x60] sm:$0xff] %vm67, %v1089
    %1161 = vst.msk [vmem:[%s3 + $0x68] sm:$0xff] %vm67, %v1092
    %1162 = vst.msk [vmem:[%s3 + $0x70] sm:$0xff] %vm67, %v1095
    %1163 = vst.msk [vmem:[%s3 + $0x78] sm:$0xff] %vm67, %v1098
    %1164 = vst.msk [vmem:[%s3 + $0x80] sm:$0xff] %vm67, %v1101
    %1165 = vst.msk [vmem:[%s3 + $0x88] sm:$0xff] %vm67, %v1104
    %1166 = vst.msk [vmem:[%s3 + $0x90] sm:$0xff] %vm67, %v1107
    %1167 = vst.msk [vmem:[%s3 + $0x98] sm:$0xff] %vm67, %v1110
    %1168 = vst.msk [vmem:[%s3 + $0xa0] sm:$0xff] %vm67, %v1113
    %1169 = vst.msk [vmem:[%s3 + $0xa8] sm:$0xff] %vm67, %v1116
    %1170 = vst.msk [vmem:[%s3 + $0xb0] sm:$0xff] %vm67, %v1119
    %1171 = vst.msk [vmem:[%s3 + $0xb8] sm:$0xff] %vm67, %v1122
    %1172 = vst.msk [vmem:[%s3 + $0xc0] sm:$0xff] %vm67, %v1125
    %1173 = vst.msk [vmem:[%s3 + $0xc8] sm:$0xff] %vm67, %v1128
    %1174 = vst.msk [vmem:[%s3 + $0xd0] sm:$0xff] %vm67, %v1131
    %1175 = vst.msk [vmem:[%s3 + $0xd8] sm:$0xff] %vm67, %v1134
    %1176 = vst.msk [vmem:[%s3 + $0xe0] sm:$0xff] %vm67, %v1137
    %1177 = vst.msk [vmem:[%s3 + $0xe8] sm:$0xff] %vm67, %v1140
    %1178 = vst.msk [vmem:[%s3 + $0xf0] sm:$0xff] %vm67, %v1143
    %1179 = vst.msk [vmem:[%s3 + $0xf8] sm:$0xff] %vm67, %v1146
    %v1180 = vperm.slane %v504, 0
    %v1181 = vperm.slane %v504, 1
    %v1182 = vperm.slane %v504, 2
    %v1183 = vperm.slane %v504, 3
    %v1184 = vperm.slane %v504, 4
    %v1185 = vperm.slane %v504, 5
    %v1186 = vperm.slane %v504, 6
    %v1187 = vperm.slane %v504, 7
    %v1188 = vperm.slane %v518, 0
    %v1189 = vperm.slane %v518, 1
    %v1190 = vperm.slane %v518, 2
    %v1191 = vperm.slane %v518, 3
    %v1192 = vperm.slane %v518, 4
    %v1193 = vperm.slane %v518, 5
    %v1194 = vperm.slane %v518, 6
    %v1195 = vperm.slane %v518, 7
    %v1196 = vperm.slane %v532, 0
    %v1197 = vperm.slane %v532, 1
    %v1198 = vperm.slane %v532, 2
    %v1199 = vperm.slane %v532, 3
    %v1200 = vperm.slane %v532, 4
    %v1201 = vperm.slane %v532, 5
    %v1202 = vperm.slane %v532, 6
    %v1203 = vperm.slane %v532, 7
    %v1204 = vperm.slane %v546, 0
    %v1205 = vperm.slane %v546, 1
    %v1206 = vperm.slane %v546, 2
    %v1207 = vperm.slane %v546, 3
    %v1208 = vperm.slane %v546, 4
    %v1209 = vperm.slane %v546, 5
    %v1210 = vperm.slane %v546, 6
    %v1211 = vperm.slane %v546, 7
    %v1212 = vperm.slane %v560, 0
    %v1213 = vperm.slane %v560, 1
    %v1214 = vperm.slane %v560, 2
    %v1215 = vperm.slane %v560, 3
    %v1216 = vperm.slane %v560, 4
    %v1217 = vperm.slane %v560, 5
    %v1218 = vperm.slane %v560, 6
    %v1219 = vperm.slane %v560, 7
    %v1220 = vperm.slane %v574, 0
    %v1221 = vperm.slane %v574, 1
    %v1222 = vperm.slane %v574, 2
    %v1223 = vperm.slane %v574, 3
    %v1224 = vperm.slane %v574, 4
    %v1225 = vperm.slane %v574, 5
    %v1226 = vperm.slane %v574, 6
    %v1227 = vperm.slane %v574, 7
    %v1228 = vperm.slane %v588, 0
    %v1229 = vperm.slane %v588, 1
    %v1230 = vperm.slane %v588, 2
    %v1231 = vperm.slane %v588, 3
    %v1232 = vperm.slane %v588, 4
    %v1233 = vperm.slane %v588, 5
    %v1234 = vperm.slane %v588, 6
    %v1235 = vperm.slane %v588, 7
    %v1236 = vperm.slane %v602, 0
    %v1237 = vperm.slane %v602, 1
    %v1238 = vperm.slane %v602, 2
    %v1239 = vperm.slane %v602, 3
    %v1240 = vperm.slane %v602, 4
    %v1241 = vperm.slane %v602, 5
    %v1242 = vperm.slane %v602, 6
    %v1243 = vperm.slane %v602, 7
    %v1244 = vperm.slane %v616, 0
    %v1245 = vperm.slane %v616, 1
    %v1246 = vperm.slane %v616, 2
    %v1247 = vperm.slane %v616, 3
    %v1248 = vperm.slane %v616, 4
    %v1249 = vperm.slane %v616, 5
    %v1250 = vperm.slane %v616, 6
    %v1251 = vperm.slane %v616, 7
    %v1252 = vperm.slane %v630, 0
    %v1253 = vperm.slane %v630, 1
    %v1254 = vperm.slane %v630, 2
    %v1255 = vperm.slane %v630, 3
    %v1256 = vperm.slane %v630, 4
    %v1257 = vperm.slane %v630, 5
    %v1258 = vperm.slane %v630, 6
    %v1259 = vperm.slane %v630, 7
    %v1260 = vperm.slane %v644, 0
    %v1261 = vperm.slane %v644, 1
    %v1262 = vperm.slane %v644, 2
    %v1263 = vperm.slane %v644, 3
    %v1264 = vperm.slane %v644, 4
    %v1265 = vperm.slane %v644, 5
    %v1266 = vperm.slane %v644, 6
    %v1267 = vperm.slane %v644, 7
    %v1268 = vperm.slane %v658, 0
    %v1269 = vperm.slane %v658, 1
    %v1270 = vperm.slane %v658, 2
    %v1271 = vperm.slane %v658, 3
    %v1272 = vperm.slane %v658, 4
    %v1273 = vperm.slane %v658, 5
    %v1274 = vperm.slane %v658, 6
    %v1275 = vperm.slane %v658, 7
    %v1276 = vperm.slane %v672, 0
    %v1277 = vperm.slane %v672, 1
    %v1278 = vperm.slane %v672, 2
    %v1279 = vperm.slane %v672, 3
    %v1280 = vperm.slane %v672, 4
    %v1281 = vperm.slane %v672, 5
    %v1282 = vperm.slane %v672, 6
    %v1283 = vperm.slane %v672, 7
    %v1284 = vperm.slane %v686, 0
    %v1285 = vperm.slane %v686, 1
    %v1286 = vperm.slane %v686, 2
    %v1287 = vperm.slane %v686, 3
    %v1288 = vperm.slane %v686, 4
    %v1289 = vperm.slane %v686, 5
    %v1290 = vperm.slane %v686, 6
    %v1291 = vperm.slane %v686, 7
    %v1292 = vperm.slane %v700, 0
    %v1293 = vperm.slane %v700, 1
    %v1294 = vperm.slane %v700, 2
    %v1295 = vperm.slane %v700, 3
    %v1296 = vperm.slane %v700, 4
    %v1297 = vperm.slane %v700, 5
    %v1298 = vperm.slane %v700, 6
    %v1299 = vperm.slane %v700, 7
    %v1300 = vperm.slane %v714, 0
    %v1301 = vperm.slane %v714, 1
    %v1302 = vperm.slane %v714, 2
    %v1303 = vperm.slane %v714, 3
    %v1304 = vperm.slane %v714, 4
    %v1305 = vperm.slane %v714, 5
    %v1306 = vperm.slane %v714, 6
    %v1307 = vperm.slane %v714, 7
    %v1308 = vperm.slane %v728, 0
    %v1309 = vperm.slane %v728, 1
    %v1310 = vperm.slane %v728, 2
    %v1311 = vperm.slane %v728, 3
    %v1312 = vperm.slane %v728, 4
    %v1313 = vperm.slane %v728, 5
    %v1314 = vperm.slane %v728, 6
    %v1315 = vperm.slane %v728, 7
    %v1316 = vperm.slane %v742, 0
    %v1317 = vperm.slane %v742, 1
    %v1318 = vperm.slane %v742, 2
    %v1319 = vperm.slane %v742, 3
    %v1320 = vperm.slane %v742, 4
    %v1321 = vperm.slane %v742, 5
    %v1322 = vperm.slane %v742, 6
    %v1323 = vperm.slane %v742, 7
    %v1324 = vperm.slane %v756, 0
    %v1325 = vperm.slane %v756, 1
    %v1326 = vperm.slane %v756, 2
    %v1327 = vperm.slane %v756, 3
    %v1328 = vperm.slane %v756, 4
    %v1329 = vperm.slane %v756, 5
    %v1330 = vperm.slane %v756, 6
    %v1331 = vperm.slane %v756, 7
    %v1332 = vperm.slane %v770, 0
    %v1333 = vperm.slane %v770, 1
    %v1334 = vperm.slane %v770, 2
    %v1335 = vperm.slane %v770, 3
    %v1336 = vperm.slane %v770, 4
    %v1337 = vperm.slane %v770, 5
    %v1338 = vperm.slane %v770, 6
    %v1339 = vperm.slane %v770, 7
    %v1340 = vperm.slane %v784, 0
    %v1341 = vperm.slane %v784, 1
    %v1342 = vperm.slane %v784, 2
    %v1343 = vperm.slane %v784, 3
    %v1344 = vperm.slane %v784, 4
    %v1345 = vperm.slane %v784, 5
    %v1346 = vperm.slane %v784, 6
    %v1347 = vperm.slane %v784, 7
    %v1348 = vperm.slane %v798, 0
    %v1349 = vperm.slane %v798, 1
    %v1350 = vperm.slane %v798, 2
    %v1351 = vperm.slane %v798, 3
    %v1352 = vperm.slane %v798, 4
    %v1353 = vperm.slane %v798, 5
    %v1354 = vperm.slane %v798, 6
    %v1355 = vperm.slane %v798, 7
    %v1356 = vperm.slane %v812, 0
    %v1357 = vperm.slane %v812, 1
    %v1358 = vperm.slane %v812, 2
    %v1359 = vperm.slane %v812, 3
    %v1360 = vperm.slane %v812, 4
    %v1361 = vperm.slane %v812, 5
    %v1362 = vperm.slane %v812, 6
    %v1363 = vperm.slane %v812, 7
    %v1364 = vperm.slane %v826, 0
    %v1365 = vperm.slane %v826, 1
    %v1366 = vperm.slane %v826, 2
    %v1367 = vperm.slane %v826, 3
    %v1368 = vperm.slane %v826, 4
    %v1369 = vperm.slane %v826, 5
    %v1370 = vperm.slane %v826, 6
    %v1371 = vperm.slane %v826, 7
    %v1372 = vperm.slane %v840, 0
    %v1373 = vperm.slane %v840, 1
    %v1374 = vperm.slane %v840, 2
    %v1375 = vperm.slane %v840, 3
    %v1376 = vperm.slane %v840, 4
    %v1377 = vperm.slane %v840, 5
    %v1378 = vperm.slane %v840, 6
    %v1379 = vperm.slane %v840, 7
    %v1380 = vperm.slane %v854, 0
    %v1381 = vperm.slane %v854, 1
    %v1382 = vperm.slane %v854, 2
    %v1383 = vperm.slane %v854, 3
    %v1384 = vperm.slane %v854, 4
    %v1385 = vperm.slane %v854, 5
    %v1386 = vperm.slane %v854, 6
    %v1387 = vperm.slane %v854, 7
    %v1388 = vperm.slane %v868, 0
    %v1389 = vperm.slane %v868, 1
    %v1390 = vperm.slane %v868, 2
    %v1391 = vperm.slane %v868, 3
    %v1392 = vperm.slane %v868, 4
    %v1393 = vperm.slane %v868, 5
    %v1394 = vperm.slane %v868, 6
    %v1395 = vperm.slane %v868, 7
    %v1396 = vperm.slane %v882, 0
    %v1397 = vperm.slane %v882, 1
    %v1398 = vperm.slane %v882, 2
    %v1399 = vperm.slane %v882, 3
    %v1400 = vperm.slane %v882, 4
    %v1401 = vperm.slane %v882, 5
    %v1402 = vperm.slane %v882, 6
    %v1403 = vperm.slane %v882, 7
    %v1404 = vperm.slane %v896, 0
    %v1405 = vperm.slane %v896, 1
    %v1406 = vperm.slane %v896, 2
    %v1407 = vperm.slane %v896, 3
    %v1408 = vperm.slane %v896, 4
    %v1409 = vperm.slane %v896, 5
    %v1410 = vperm.slane %v896, 6
    %v1411 = vperm.slane %v896, 7
    %v1412 = vperm.slane %v910, 0
    %v1413 = vperm.slane %v910, 1
    %v1414 = vperm.slane %v910, 2
    %v1415 = vperm.slane %v910, 3
    %v1416 = vperm.slane %v910, 4
    %v1417 = vperm.slane %v910, 5
    %v1418 = vperm.slane %v910, 6
    %v1419 = vperm.slane %v910, 7
    %v1420 = vperm.slane %v924, 0
    %v1421 = vperm.slane %v924, 1
    %v1422 = vperm.slane %v924, 2
    %v1423 = vperm.slane %v924, 3
    %v1424 = vperm.slane %v924, 4
    %v1425 = vperm.slane %v924, 5
    %v1426 = vperm.slane %v924, 6
    %v1427 = vperm.slane %v924, 7
    %v1428 = vperm.slane %v938, 0
    %v1429 = vperm.slane %v938, 1
    %v1430 = vperm.slane %v938, 2
    %v1431 = vperm.slane %v938, 3
    %v1432 = vperm.slane %v938, 4
    %v1433 = vperm.slane %v938, 5
    %v1434 = vperm.slane %v938, 6
    %v1435 = vperm.slane %v938, 7
    %1436 = vst [vmem:[#allocation1] ss:$9 sm:$0xff] %v1180
    %s1437 = scalar_lea.vmem [#allocation1], 1
    %1438 = vst [vmem:[%s1437] ss:$9 sm:$0xff] %v1181
    %s1439 = scalar_lea.vmem [#allocation1], 2
    %1440 = vst [vmem:[%s1439] ss:$9 sm:$0xff] %v1182
    %s1441 = scalar_lea.vmem [#allocation1], 3
    %1442 = vst [vmem:[%s1441] ss:$9 sm:$0xff] %v1183
    %s1443 = scalar_lea.vmem [#allocation1], 4
    %1444 = vst [vmem:[%s1443] ss:$9 sm:$0xff] %v1184
    %s1445 = scalar_lea.vmem [#allocation1], 5
    %1446 = vst [vmem:[%s1445] ss:$9 sm:$0xff] %v1185
    %s1447 = scalar_lea.vmem [#allocation1], 6
    %1448 = vst [vmem:[%s1447] ss:$9 sm:$0xff] %v1186
    %s1449 = scalar_lea.vmem [#allocation1], 7
    %1450 = vst [vmem:[%s1449] ss:$9 sm:$0xff] %v1187
    %v1451 = vld [vmem:[#allocation1] sm:$0xff]
    %1452 = vst [vmem:[#allocation1] ss:$9 sm:$0xff] %v1188
    %1453 = vst [vmem:[%s1437] ss:$9 sm:$0xff] %v1189
    %1454 = vst [vmem:[%s1439] ss:$9 sm:$0xff] %v1190
    %1455 = vst [vmem:[%s1441] ss:$9 sm:$0xff] %v1191
    %1456 = vst [vmem:[%s1443] ss:$9 sm:$0xff] %v1192
    %1457 = vst [vmem:[%s1445] ss:$9 sm:$0xff] %v1193
    %1458 = vst [vmem:[%s1447] ss:$9 sm:$0xff] %v1194
    %1459 = vst [vmem:[%s1449] ss:$9 sm:$0xff] %v1195
    %v1460 = vld [vmem:[#allocation1] sm:$0xff]
    %1461 = vst [vmem:[#allocation1] ss:$9 sm:$0xff] %v1196
    %1462 = vst [vmem:[%s1437] ss:$9 sm:$0xff] %v1197
    %1463 = vst [vmem:[%s1439] ss:$9 sm:$0xff] %v1198
    %1464 = vst [vmem:[%s1441] ss:$9 sm:$0xff] %v1199
    %1465 = vst [vmem:[%s1443] ss:$9 sm:$0xff] %v1200
    %1466 = vst [vmem:[%s1445] ss:$9 sm:$0xff] %v1201
    %1467 = vst [vmem:[%s1447] ss:$9 sm:$0xff] %v1202
    %1468 = vst [vmem:[%s1449] ss:$9 sm:$0xff] %v1203
    %v1469 = vld [vmem:[#allocation1] sm:$0xff]
    %1470 = vst [vmem:[#allocation1] ss:$9 sm:$0xff] %v1204
    %1471 = vst [vmem:[%s1437] ss:$9 sm:$0xff] %v1205
    %1472 = vst [vmem:[%s1439] ss:$9 sm:$0xff] %v1206
    %1473 = vst [vmem:[%s1441] ss:$9 sm:$0xff] %v1207
    %1474 = vst [vmem:[%s1443] ss:$9 sm:$0xff] %v1208
    %1475 = vst [vmem:[%s1445] ss:$9 sm:$0xff] %v1209
    %1476 = vst [vmem:[%s1447] ss:$9 sm:$0xff] %v1210
    %1477 = vst [vmem:[%s1449] ss:$9 sm:$0xff] %v1211
    %v1478 = vld [vmem:[#allocation1] sm:$0xff]
    %1479 = vst [vmem:[#allocation1] ss:$9 sm:$0xff] %v1212
    %1480 = vst [vmem:[%s1437] ss:$9 sm:$0xff] %v1213
    %1481 = vst [vmem:[%s1439] ss:$9 sm:$0xff] %v1214
    %1482 = vst [vmem:[%s1441] ss:$9 sm:$0xff] %v1215
    %1483 = vst [vmem:[%s1443] ss:$9 sm:$0xff] %v1216
    %1484 = vst [vmem:[%s1445] ss:$9 sm:$0xff] %v1217
    %1485 = vst [vmem:[%s1447] ss:$9 sm:$0xff] %v1218
    %1486 = vst [vmem:[%s1449] ss:$9 sm:$0xff] %v1219
    %v1487 = vld [vmem:[#allocation1] sm:$0xff]
    %1488 = vst [vmem:[#allocation1] ss:$9 sm:$0xff] %v1220
    %1489 = vst [vmem:[%s1437] ss:$9 sm:$0xff] %v1221
    %1490 = vst [vmem:[%s1439] ss:$9 sm:$0xff] %v1222
    %1491 = vst [vmem:[%s1441] ss:$9 sm:$0xff] %v1223
    %1492 = vst [vmem:[%s1443] ss:$9 sm:$0xff] %v1224
    %1493 = vst [vmem:[%s1445] ss:$9 sm:$0xff] %v1225
    %1494 = vst [vmem:[%s1447] ss:$9 sm:$0xff] %v1226
    %1495 = vst [vmem:[%s1449] ss:$9 sm:$0xff] %v1227
    %v1496 = vld [vmem:[#allocation1] sm:$0xff]
    %1497 = vst [vmem:[#allocation1] ss:$9 sm:$0xff] %v1228
    %1498 = vst [vmem:[%s1437] ss:$9 sm:$0xff] %v1229
    %1499 = vst [vmem:[%s1439] ss:$9 sm:$0xff] %v1230
    %1500 = vst [vmem:[%s1441] ss:$9 sm:$0xff] %v1231
    %1501 = vst [vmem:[%s1443] ss:$9 sm:$0xff] %v1232
    %1502 = vst [vmem:[%s1445] ss:$9 sm:$0xff] %v1233
    %1503 = vst [vmem:[%s1447] ss:$9 sm:$0xff] %v1234
    %1504 = vst [vmem:[%s1449] ss:$9 sm:$0xff] %v1235
    %v1505 = vld [vmem:[#allocation1] sm:$0xff]
    %1506 = vst [vmem:[#allocation1] ss:$9 sm:$0xff] %v1236
    %1507 = vst [vmem:[%s1437] ss:$9 sm:$0xff] %v1237
    %1508 = vst [vmem:[%s1439] ss:$9 sm:$0xff] %v1238
    %1509 = vst [vmem:[%s1441] ss:$9 sm:$0xff] %v1239
    %1510 = vst [vmem:[%s1443] ss:$9 sm:$0xff] %v1240
    %1511 = vst [vmem:[%s1445] ss:$9 sm:$0xff] %v1241
    %1512 = vst [vmem:[%s1447] ss:$9 sm:$0xff] %v1242
    %1513 = vst [vmem:[%s1449] ss:$9 sm:$0xff] %v1243
    %v1514 = vld [vmem:[#allocation1] sm:$0xff]
    %1515 = vst [vmem:[#allocation1] ss:$9 sm:$0xff] %v1244
    %1516 = vst [vmem:[%s1437] ss:$9 sm:$0xff] %v1245
    %1517 = vst [vmem:[%s1439] ss:$9 sm:$0xff] %v1246
    %1518 = vst [vmem:[%s1441] ss:$9 sm:$0xff] %v1247
    %1519 = vst [vmem:[%s1443] ss:$9 sm:$0xff] %v1248
    %1520 = vst [vmem:[%s1445] ss:$9 sm:$0xff] %v1249
    %1521 = vst [vmem:[%s1447] ss:$9 sm:$0xff] %v1250
    %1522 = vst [vmem:[%s1449] ss:$9 sm:$0xff] %v1251
    %v1523 = vld [vmem:[#allocation1] sm:$0xff]
    %1524 = vst [vmem:[#allocation1] ss:$9 sm:$0xff] %v1252
    %1525 = vst [vmem:[%s1437] ss:$9 sm:$0xff] %v1253
    %1526 = vst [vmem:[%s1439] ss:$9 sm:$0xff] %v1254
    %1527 = vst [vmem:[%s1441] ss:$9 sm:$0xff] %v1255
    %1528 = vst [vmem:[%s1443] ss:$9 sm:$0xff] %v1256
    %1529 = vst [vmem:[%s1445] ss:$9 sm:$0xff] %v1257
    %1530 = vst [vmem:[%s1447] ss:$9 sm:$0xff] %v1258
    %1531 = vst [vmem:[%s1449] ss:$9 sm:$0xff] %v1259
    %v1532 = vld [vmem:[#allocation1] sm:$0xff]
    %1533 = vst [vmem:[#allocation1] ss:$9 sm:$0xff] %v1260
    %1534 = vst [vmem:[%s1437] ss:$9 sm:$0xff] %v1261
    %1535 = vst [vmem:[%s1439] ss:$9 sm:$0xff] %v1262
    %1536 = vst [vmem:[%s1441] ss:$9 sm:$0xff] %v1263
    %1537 = vst [vmem:[%s1443] ss:$9 sm:$0xff] %v1264
    %1538 = vst [vmem:[%s1445] ss:$9 sm:$0xff] %v1265
    %1539 = vst [vmem:[%s1447] ss:$9 sm:$0xff] %v1266
    %1540 = vst [vmem:[%s1449] ss:$9 sm:$0xff] %v1267
    %v1541 = vld [vmem:[#allocation1] sm:$0xff]
    %1542 = vst [vmem:[#allocation1] ss:$9 sm:$0xff] %v1268
    %1543 = vst [vmem:[%s1437] ss:$9 sm:$0xff] %v1269
    %1544 = vst [vmem:[%s1439] ss:$9 sm:$0xff] %v1270
    %1545 = vst [vmem:[%s1441] ss:$9 sm:$0xff] %v1271
    %1546 = vst [vmem:[%s1443] ss:$9 sm:$0xff] %v1272
    %1547 = vst [vmem:[%s1445] ss:$9 sm:$0xff] %v1273
    %1548 = vst [vmem:[%s1447] ss:$9 sm:$0xff] %v1274
    %1549 = vst [vmem:[%s1449] ss:$9 sm:$0xff] %v1275
    %v1550 = vld [vmem:[#allocation1] sm:$0xff]
    %1551 = vst [vmem:[#allocation1] ss:$9 sm:$0xff] %v1276
    %1552 = vst [vmem:[%s1437] ss:$9 sm:$0xff] %v1277
    %1553 = vst [vmem:[%s1439] ss:$9 sm:$0xff] %v1278
    %1554 = vst [vmem:[%s1441] ss:$9 sm:$0xff] %v1279
    %1555 = vst [vmem:[%s1443] ss:$9 sm:$0xff] %v1280
    %1556 = vst [vmem:[%s1445] ss:$9 sm:$0xff] %v1281
    %1557 = vst [vmem:[%s1447] ss:$9 sm:$0xff] %v1282
    %1558 = vst [vmem:[%s1449] ss:$9 sm:$0xff] %v1283
    %v1559 = vld [vmem:[#allocation1] sm:$0xff]
    %1560 = vst [vmem:[#allocation1] ss:$9 sm:$0xff] %v1284
    %1561 = vst [vmem:[%s1437] ss:$9 sm:$0xff] %v1285
    %1562 = vst [vmem:[%s1439] ss:$9 sm:$0xff] %v1286
    %1563 = vst [vmem:[%s1441] ss:$9 sm:$0xff] %v1287
    %1564 = vst [vmem:[%s1443] ss:$9 sm:$0xff] %v1288
    %1565 = vst [vmem:[%s1445] ss:$9 sm:$0xff] %v1289
    %1566 = vst [vmem:[%s1447] ss:$9 sm:$0xff] %v1290
    %1567 = vst [vmem:[%s1449] ss:$9 sm:$0xff] %v1291
    %v1568 = vld [vmem:[#allocation1] sm:$0xff]
    %1569 = vst [vmem:[#allocation1] ss:$9 sm:$0xff] %v1292
    %1570 = vst [vmem:[%s1437] ss:$9 sm:$0xff] %v1293
    %1571 = vst [vmem:[%s1439] ss:$9 sm:$0xff] %v1294
    %1572 = vst [vmem:[%s1441] ss:$9 sm:$0xff] %v1295
    %1573 = vst [vmem:[%s1443] ss:$9 sm:$0xff] %v1296
    %1574 = vst [vmem:[%s1445] ss:$9 sm:$0xff] %v1297
    %1575 = vst [vmem:[%s1447] ss:$9 sm:$0xff] %v1298
    %1576 = vst [vmem:[%s1449] ss:$9 sm:$0xff] %v1299
    %v1577 = vld [vmem:[#allocation1] sm:$0xff]
    %1578 = vst [vmem:[#allocation1] ss:$9 sm:$0xff] %v1300
    %1579 = vst [vmem:[%s1437] ss:$9 sm:$0xff] %v1301
    %1580 = vst [vmem:[%s1439] ss:$9 sm:$0xff] %v1302
    %1581 = vst [vmem:[%s1441] ss:$9 sm:$0xff] %v1303
    %1582 = vst [vmem:[%s1443] ss:$9 sm:$0xff] %v1304
    %1583 = vst [vmem:[%s1445] ss:$9 sm:$0xff] %v1305
    %1584 = vst [vmem:[%s1447] ss:$9 sm:$0xff] %v1306
    %1585 = vst [vmem:[%s1449] ss:$9 sm:$0xff] %v1307
    %v1586 = vld [vmem:[#allocation1] sm:$0xff]
    %1587 = vst [vmem:[#allocation1] ss:$9 sm:$0xff] %v1308
    %1588 = vst [vmem:[%s1437] ss:$9 sm:$0xff] %v1309
    %1589 = vst [vmem:[%s1439] ss:$9 sm:$0xff] %v1310
    %1590 = vst [vmem:[%s1441] ss:$9 sm:$0xff] %v1311
    %1591 = vst [vmem:[%s1443] ss:$9 sm:$0xff] %v1312
    %1592 = vst [vmem:[%s1445] ss:$9 sm:$0xff] %v1313
    %1593 = vst [vmem:[%s1447] ss:$9 sm:$0xff] %v1314
    %1594 = vst [vmem:[%s1449] ss:$9 sm:$0xff] %v1315
    %v1595 = vld [vmem:[#allocation1] sm:$0xff]
    %1596 = vst [vmem:[#allocation1] ss:$9 sm:$0xff] %v1316
    %1597 = vst [vmem:[%s1437] ss:$9 sm:$0xff] %v1317
    %1598 = vst [vmem:[%s1439] ss:$9 sm:$0xff] %v1318
    %1599 = vst [vmem:[%s1441] ss:$9 sm:$0xff] %v1319
    %1600 = vst [vmem:[%s1443] ss:$9 sm:$0xff] %v1320
    %1601 = vst [vmem:[%s1445] ss:$9 sm:$0xff] %v1321
    %1602 = vst [vmem:[%s1447] ss:$9 sm:$0xff] %v1322
    %1603 = vst [vmem:[%s1449] ss:$9 sm:$0xff] %v1323
    %v1604 = vld [vmem:[#allocation1] sm:$0xff]
    %1605 = vst [vmem:[#allocation1] ss:$9 sm:$0xff] %v1324
    %1606 = vst [vmem:[%s1437] ss:$9 sm:$0xff] %v1325
    %1607 = vst [vmem:[%s1439] ss:$9 sm:$0xff] %v1326
    %1608 = vst [vmem:[%s1441] ss:$9 sm:$0xff] %v1327
    %1609 = vst [vmem:[%s1443] ss:$9 sm:$0xff] %v1328
    %1610 = vst [vmem:[%s1445] ss:$9 sm:$0xff] %v1329
    %1611 = vst [vmem:[%s1447] ss:$9 sm:$0xff] %v1330
    %1612 = vst [vmem:[%s1449] ss:$9 sm:$0xff] %v1331
    %v1613 = vld [vmem:[#allocation1] sm:$0xff]
    %1614 = vst [vmem:[#allocation1] ss:$9 sm:$0xff] %v1332
    %1615 = vst [vmem:[%s1437] ss:$9 sm:$0xff] %v1333
    %1616 = vst [vmem:[%s1439] ss:$9 sm:$0xff] %v1334
    %1617 = vst [vmem:[%s1441] ss:$9 sm:$0xff] %v1335
    %1618 = vst [vmem:[%s1443] ss:$9 sm:$0xff] %v1336
    %1619 = vst [vmem:[%s1445] ss:$9 sm:$0xff] %v1337
    %1620 = vst [vmem:[%s1447] ss:$9 sm:$0xff] %v1338
    %1621 = vst [vmem:[%s1449] ss:$9 sm:$0xff] %v1339
    %v1622 = vld [vmem:[#allocation1] sm:$0xff]
    %1623 = vst [vmem:[#allocation1] ss:$9 sm:$0xff] %v1340
    %1624 = vst [vmem:[%s1437] ss:$9 sm:$0xff] %v1341
    %1625 = vst [vmem:[%s1439] ss:$9 sm:$0xff] %v1342
    %1626 = vst [vmem:[%s1441] ss:$9 sm:$0xff] %v1343
    %1627 = vst [vmem:[%s1443] ss:$9 sm:$0xff] %v1344
    %1628 = vst [vmem:[%s1445] ss:$9 sm:$0xff] %v1345
    %1629 = vst [vmem:[%s1447] ss:$9 sm:$0xff] %v1346
    %1630 = vst [vmem:[%s1449] ss:$9 sm:$0xff] %v1347
    %v1631 = vld [vmem:[#allocation1] sm:$0xff]
    %1632 = vst [vmem:[#allocation1] ss:$9 sm:$0xff] %v1348
    %1633 = vst [vmem:[%s1437] ss:$9 sm:$0xff] %v1349
    %1634 = vst [vmem:[%s1439] ss:$9 sm:$0xff] %v1350
    %1635 = vst [vmem:[%s1441] ss:$9 sm:$0xff] %v1351
    %1636 = vst [vmem:[%s1443] ss:$9 sm:$0xff] %v1352
    %1637 = vst [vmem:[%s1445] ss:$9 sm:$0xff] %v1353
    %1638 = vst [vmem:[%s1447] ss:$9 sm:$0xff] %v1354
    %1639 = vst [vmem:[%s1449] ss:$9 sm:$0xff] %v1355
    %v1640 = vld [vmem:[#allocation1] sm:$0xff]
    %1641 = vst [vmem:[#allocation1] ss:$9 sm:$0xff] %v1356
    %1642 = vst [vmem:[%s1437] ss:$9 sm:$0xff] %v1357
    %1643 = vst [vmem:[%s1439] ss:$9 sm:$0xff] %v1358
    %1644 = vst [vmem:[%s1441] ss:$9 sm:$0xff] %v1359
    %1645 = vst [vmem:[%s1443] ss:$9 sm:$0xff] %v1360
    %1646 = vst [vmem:[%s1445] ss:$9 sm:$0xff] %v1361
    %1647 = vst [vmem:[%s1447] ss:$9 sm:$0xff] %v1362
    %1648 = vst [vmem:[%s1449] ss:$9 sm:$0xff] %v1363
    %v1649 = vld [vmem:[#allocation1] sm:$0xff]
    %1650 = vst [vmem:[#allocation1] ss:$9 sm:$0xff] %v1364
    %1651 = vst [vmem:[%s1437] ss:$9 sm:$0xff] %v1365
    %1652 = vst [vmem:[%s1439] ss:$9 sm:$0xff] %v1366
    %1653 = vst [vmem:[%s1441] ss:$9 sm:$0xff] %v1367
    %1654 = vst [vmem:[%s1443] ss:$9 sm:$0xff] %v1368
    %1655 = vst [vmem:[%s1445] ss:$9 sm:$0xff] %v1369
    %1656 = vst [vmem:[%s1447] ss:$9 sm:$0xff] %v1370
    %1657 = vst [vmem:[%s1449] ss:$9 sm:$0xff] %v1371
    %v1658 = vld [vmem:[#allocation1] sm:$0xff]
    %1659 = vst [vmem:[#allocation1] ss:$9 sm:$0xff] %v1372
    %1660 = vst [vmem:[%s1437] ss:$9 sm:$0xff] %v1373
    %1661 = vst [vmem:[%s1439] ss:$9 sm:$0xff] %v1374
    %1662 = vst [vmem:[%s1441] ss:$9 sm:$0xff] %v1375
    %1663 = vst [vmem:[%s1443] ss:$9 sm:$0xff] %v1376
    %1664 = vst [vmem:[%s1445] ss:$9 sm:$0xff] %v1377
    %1665 = vst [vmem:[%s1447] ss:$9 sm:$0xff] %v1378
    %1666 = vst [vmem:[%s1449] ss:$9 sm:$0xff] %v1379
    %v1667 = vld [vmem:[#allocation1] sm:$0xff]
    %1668 = vst [vmem:[#allocation1] ss:$9 sm:$0xff] %v1380
    %1669 = vst [vmem:[%s1437] ss:$9 sm:$0xff] %v1381
    %1670 = vst [vmem:[%s1439] ss:$9 sm:$0xff] %v1382
    %1671 = vst [vmem:[%s1441] ss:$9 sm:$0xff] %v1383
    %1672 = vst [vmem:[%s1443] ss:$9 sm:$0xff] %v1384
    %1673 = vst [vmem:[%s1445] ss:$9 sm:$0xff] %v1385
    %1674 = vst [vmem:[%s1447] ss:$9 sm:$0xff] %v1386
    %1675 = vst [vmem:[%s1449] ss:$9 sm:$0xff] %v1387
    %v1676 = vld [vmem:[#allocation1] sm:$0xff]
    %1677 = vst [vmem:[#allocation1] ss:$9 sm:$0xff] %v1388
    %1678 = vst [vmem:[%s1437] ss:$9 sm:$0xff] %v1389
    %1679 = vst [vmem:[%s1439] ss:$9 sm:$0xff] %v1390
    %1680 = vst [vmem:[%s1441] ss:$9 sm:$0xff] %v1391
    %1681 = vst [vmem:[%s1443] ss:$9 sm:$0xff] %v1392
    %1682 = vst [vmem:[%s1445] ss:$9 sm:$0xff] %v1393
    %1683 = vst [vmem:[%s1447] ss:$9 sm:$0xff] %v1394
    %1684 = vst [vmem:[%s1449] ss:$9 sm:$0xff] %v1395
    %v1685 = vld [vmem:[#allocation1] sm:$0xff]
    %1686 = vst [vmem:[#allocation1] ss:$9 sm:$0xff] %v1396
    %1687 = vst [vmem:[%s1437] ss:$9 sm:$0xff] %v1397
    %1688 = vst [vmem:[%s1439] ss:$9 sm:$0xff] %v1398
    %1689 = vst [vmem:[%s1441] ss:$9 sm:$0xff] %v1399
    %1690 = vst [vmem:[%s1443] ss:$9 sm:$0xff] %v1400
    %1691 = vst [vmem:[%s1445] ss:$9 sm:$0xff] %v1401
    %1692 = vst [vmem:[%s1447] ss:$9 sm:$0xff] %v1402
    %1693 = vst [vmem:[%s1449] ss:$9 sm:$0xff] %v1403
    %v1694 = vld [vmem:[#allocation1] sm:$0xff]
    %1695 = vst [vmem:[#allocation1] ss:$9 sm:$0xff] %v1404
    %1696 = vst [vmem:[%s1437] ss:$9 sm:$0xff] %v1405
    %1697 = vst [vmem:[%s1439] ss:$9 sm:$0xff] %v1406
    %1698 = vst [vmem:[%s1441] ss:$9 sm:$0xff] %v1407
    %1699 = vst [vmem:[%s1443] ss:$9 sm:$0xff] %v1408
    %1700 = vst [vmem:[%s1445] ss:$9 sm:$0xff] %v1409
    %1701 = vst [vmem:[%s1447] ss:$9 sm:$0xff] %v1410
    %1702 = vst [vmem:[%s1449] ss:$9 sm:$0xff] %v1411
    %v1703 = vld [vmem:[#allocation1] sm:$0xff]
    %1704 = vst [vmem:[#allocation1] ss:$9 sm:$0xff] %v1412
    %1705 = vst [vmem:[%s1437] ss:$9 sm:$0xff] %v1413
    %1706 = vst [vmem:[%s1439] ss:$9 sm:$0xff] %v1414
    %1707 = vst [vmem:[%s1441] ss:$9 sm:$0xff] %v1415
    %1708 = vst [vmem:[%s1443] ss:$9 sm:$0xff] %v1416
    %1709 = vst [vmem:[%s1445] ss:$9 sm:$0xff] %v1417
    %1710 = vst [vmem:[%s1447] ss:$9 sm:$0xff] %v1418
    %1711 = vst [vmem:[%s1449] ss:$9 sm:$0xff] %v1419
    %v1712 = vld [vmem:[#allocation1] sm:$0xff]
    %1713 = vst [vmem:[#allocation1] ss:$9 sm:$0xff] %v1420
    %1714 = vst [vmem:[%s1437] ss:$9 sm:$0xff] %v1421
    %1715 = vst [vmem:[%s1439] ss:$9 sm:$0xff] %v1422
    %1716 = vst [vmem:[%s1441] ss:$9 sm:$0xff] %v1423
    %1717 = vst [vmem:[%s1443] ss:$9 sm:$0xff] %v1424
    %1718 = vst [vmem:[%s1445] ss:$9 sm:$0xff] %v1425
    %1719 = vst [vmem:[%s1447] ss:$9 sm:$0xff] %v1426
    %1720 = vst [vmem:[%s1449] ss:$9 sm:$0xff] %v1427
    %v1721 = vld [vmem:[#allocation1] sm:$0xff]
    %1722 = vst [vmem:[#allocation1] ss:$9 sm:$0xff] %v1428
    %1723 = vst [vmem:[%s1437] ss:$9 sm:$0xff] %v1429
    %1724 = vst [vmem:[%s1439] ss:$9 sm:$0xff] %v1430
    %1725 = vst [vmem:[%s1441] ss:$9 sm:$0xff] %v1431
    %1726 = vst [vmem:[%s1443] ss:$9 sm:$0xff] %v1432
    %1727 = vst [vmem:[%s1445] ss:$9 sm:$0xff] %v1433
    %1728 = vst [vmem:[%s1447] ss:$9 sm:$0xff] %v1434
    %1729 = vst [vmem:[%s1449] ss:$9 sm:$0xff] %v1435
    %v1730 = vld [vmem:[#allocation1] sm:$0xff]
    %1731 = vset.pattern.permute.xlu0 0
    %1732 = vperm.xlu0 %1731, %v1451
    %v1733 = vpop.permute.xlu0 %1732
    %1734 = vset.pattern.permute.xlu0 0
    %1735 = vperm.xlu0 %1734, %v1460
    %v1736 = vpop.permute.xlu0 %1735
    %1737 = vset.pattern.permute.xlu0 0
    %1738 = vperm.xlu0 %1737, %v1469
    %v1739 = vpop.permute.xlu0 %1738
    %1740 = vset.pattern.permute.xlu0 0
    %1741 = vperm.xlu0 %1740, %v1478
    %v1742 = vpop.permute.xlu0 %1741
    %1743 = vset.pattern.permute.xlu0 0
    %1744 = vperm.xlu0 %1743, %v1487
    %v1745 = vpop.permute.xlu0 %1744
    %1746 = vset.pattern.permute.xlu0 0
    %1747 = vperm.xlu0 %1746, %v1496
    %v1748 = vpop.permute.xlu0 %1747
    %1749 = vset.pattern.permute.xlu0 0
    %1750 = vperm.xlu0 %1749, %v1505
    %v1751 = vpop.permute.xlu0 %1750
    %1752 = vset.pattern.permute.xlu0 0
    %1753 = vperm.xlu0 %1752, %v1514
    %v1754 = vpop.permute.xlu0 %1753
    %1755 = vset.pattern.permute.xlu0 0
    %1756 = vperm.xlu0 %1755, %v1523
    %v1757 = vpop.permute.xlu0 %1756
    %1758 = vset.pattern.permute.xlu0 0
    %1759 = vperm.xlu0 %1758, %v1532
    %v1760 = vpop.permute.xlu0 %1759
    %1761 = vset.pattern.permute.xlu0 0
    %1762 = vperm.xlu0 %1761, %v1541
    %v1763 = vpop.permute.xlu0 %1762
    %1764 = vset.pattern.permute.xlu0 0
    %1765 = vperm.xlu0 %1764, %v1550
    %v1766 = vpop.permute.xlu0 %1765
    %1767 = vset.pattern.permute.xlu0 0
    %1768 = vperm.xlu0 %1767, %v1559
    %v1769 = vpop.permute.xlu0 %1768
    %1770 = vset.pattern.permute.xlu0 0
    %1771 = vperm.xlu0 %1770, %v1568
    %v1772 = vpop.permute.xlu0 %1771
    %1773 = vset.pattern.permute.xlu0 0
    %1774 = vperm.xlu0 %1773, %v1577
    %v1775 = vpop.permute.xlu0 %1774
    %1776 = vset.pattern.permute.xlu0 0
    %1777 = vperm.xlu0 %1776, %v1586
    %v1778 = vpop.permute.xlu0 %1777
    %1779 = vset.pattern.permute.xlu0 0
    %1780 = vperm.xlu0 %1779, %v1595
    %v1781 = vpop.permute.xlu0 %1780
    %1782 = vset.pattern.permute.xlu0 0
    %1783 = vperm.xlu0 %1782, %v1604
    %v1784 = vpop.permute.xlu0 %1783
    %1785 = vset.pattern.permute.xlu0 0
    %1786 = vperm.xlu0 %1785, %v1613
    %v1787 = vpop.permute.xlu0 %1786
    %1788 = vset.pattern.permute.xlu0 0
    %1789 = vperm.xlu0 %1788, %v1622
    %v1790 = vpop.permute.xlu0 %1789
    %1791 = vset.pattern.permute.xlu0 0
    %1792 = vperm.xlu0 %1791, %v1631
    %v1793 = vpop.permute.xlu0 %1792
    %1794 = vset.pattern.permute.xlu0 0
    %1795 = vperm.xlu0 %1794, %v1640
    %v1796 = vpop.permute.xlu0 %1795
    %1797 = vset.pattern.permute.xlu0 0
    %1798 = vperm.xlu0 %1797, %v1649
    %v1799 = vpop.permute.xlu0 %1798
    %1800 = vset.pattern.permute.xlu0 0
    %1801 = vperm.xlu0 %1800, %v1658
    %v1802 = vpop.permute.xlu0 %1801
    %1803 = vset.pattern.permute.xlu0 0
    %1804 = vperm.xlu0 %1803, %v1667
    %v1805 = vpop.permute.xlu0 %1804
    %1806 = vset.pattern.permute.xlu0 0
    %1807 = vperm.xlu0 %1806, %v1676
    %v1808 = vpop.permute.xlu0 %1807
    %1809 = vset.pattern.permute.xlu0 0
    %1810 = vperm.xlu0 %1809, %v1685
    %v1811 = vpop.permute.xlu0 %1810
    %1812 = vset.pattern.permute.xlu0 0
    %1813 = vperm.xlu0 %1812, %v1694
    %v1814 = vpop.permute.xlu0 %1813
    %1815 = vset.pattern.permute.xlu0 0
    %1816 = vperm.xlu0 %1815, %v1703
    %v1817 = vpop.permute.xlu0 %1816
    %1818 = vset.pattern.permute.xlu0 0
    %1819 = vperm.xlu0 %1818, %v1712
    %v1820 = vpop.permute.xlu0 %1819
    %1821 = vset.pattern.permute.xlu0 0
    %1822 = vperm.xlu0 %1821, %v1721
    %v1823 = vpop.permute.xlu0 %1822
    %1824 = vset.pattern.permute.xlu0 0
    %1825 = vperm.xlu0 %1824, %v1730
    %v1826 = vpop.permute.xlu0 %1825
    %v1827 = vperm.slane %v1733, %v426
    %v1828 = vadd.s32 %v426, 4294967288
    %v1829 = vperm.slane %v1736, %v1828
    %vm1830 = vcmask 130112
    %v1831 = vsel %vm1830, %v1829, %v1827
    %v1832 = vadd.s32 %v426, 4294967280
    %v1833 = vperm.slane %v1739, %v1832
    %vm1834 = vcmask 195712
    %v1835 = vsel %vm1834, %v1833, %v1831
    %v1836 = vadd.s32 %v426, 4294967272
    %v1837 = vperm.slane %v1742, %v1836
    %vm1838 = vcmask 261312
    %v1839 = vsel %vm1838, %v1837, %v1835
    %v1840 = vadd.s32 %v426, 4294967264
    %v1841 = vperm.slane %v1745, %v1840
    %vm1842 = vcmask 326912
    %v1843 = vsel %vm1842, %v1841, %v1839
    %v1844 = vadd.s32 %v426, 4294967256
    %v1845 = vperm.slane %v1748, %v1844
    %vm1846 = vcmask 392512
    %v1847 = vsel %vm1846, %v1845, %v1843
    %v1848 = vadd.s32 %v426, 4294967248
    %v1849 = vperm.slane %v1751, %v1848
    %vm1850 = vcmask 458112
    %v1851 = vsel %vm1850, %v1849, %v1847
    %v1852 = vadd.s32 %v426, 4294967240
    %v1853 = vperm.slane %v1754, %v1852
    %vm1854 = vcmask 523712
    %v1855 = vsel %vm1854, %v1853, %v1851
    %v1856 = vadd.s32 %v426, 4294967232
    %v1857 = vperm.slane %v1757, %v1856
    %vm1858 = vcmask 589312
    %v1859 = vsel %vm1858, %v1857, %v1855
    %v1860 = vadd.s32 %v426, 4294967224
    %v1861 = vperm.slane %v1760, %v1860
    %vm1862 = vcmask 654912
    %v1863 = vsel %vm1862, %v1861, %v1859
    %v1864 = vadd.s32 %v426, 4294967216
    %v1865 = vperm.slane %v1763, %v1864
    %vm1866 = vcmask 720512
    %v1867 = vsel %vm1866, %v1865, %v1863
    %v1868 = vadd.s32 %v426, 4294967208
    %v1869 = vperm.slane %v1766, %v1868
    %vm1870 = vcmask 786112
    %v1871 = vsel %vm1870, %v1869, %v1867
    %v1872 = vadd.s32 %v426, 4294967200
    %v1873 = vperm.slane %v1769, %v1872
    %vm1874 = vcmask 851712
    %v1875 = vsel %vm1874, %v1873, %v1871
    %v1876 = vadd.s32 %v426, 4294967192
    %v1877 = vperm.slane %v1772, %v1876
    %vm1878 = vcmask 917312
    %v1879 = vsel %vm1878, %v1877, %v1875
    %v1880 = vadd.s32 %v426, 4294967184
    %v1881 = vperm.slane %v1775, %v1880
    %vm1882 = vcmask 982912
    %v1883 = vsel %vm1882, %v1881, %v1879
    %v1884 = vadd.s32 %v426, 4294967176
    %v1885 = vperm.slane %v1778, %v1884
    %vm1886 = vcmask 1048512
    %v1887 = vsel %vm1886, %v1885, %v1883
    %v1888 = vperm.slane %v1781, %v426
    %v1889 = vperm.slane %v1784, %v1828
    %v1890 = vsel %vm1830, %v1889, %v1888
    %v1891 = vperm.slane %v1787, %v1832
    %v1892 = vsel %vm1834, %v1891, %v1890
    %v1893 = vperm.slane %v1790, %v1836
    %v1894 = vsel %vm1838, %v1893, %v1892
    %v1895 = vperm.slane %v1793, %v1840
    %v1896 = vsel %vm1842, %v1895, %v1894
    %v1897 = vperm.slane %v1796, %v1844
    %v1898 = vsel %vm1846, %v1897, %v1896
    %v1899 = vperm.slane %v1799, %v1848
    %v1900 = vsel %vm1850, %v1899, %v1898
    %v1901 = vperm.slane %v1802, %v1852
    %v1902 = vsel %vm1854, %v1901, %v1900
    %v1903 = vperm.slane %v1805, %v1856
    %v1904 = vsel %vm1858, %v1903, %v1902
    %v1905 = vperm.slane %v1808, %v1860
    %v1906 = vsel %vm1862, %v1905, %v1904
    %v1907 = vperm.slane %v1811, %v1864
    %v1908 = vsel %vm1866, %v1907, %v1906
    %v1909 = vperm.slane %v1814, %v1868
    %v1910 = vsel %vm1870, %v1909, %v1908
    %v1911 = vperm.slane %v1817, %v1872
    %v1912 = vsel %vm1874, %v1911, %v1910
    %v1913 = vperm.slane %v1820, %v1876
    %v1914 = vsel %vm1878, %v1913, %v1912
    %v1915 = vperm.slane %v1823, %v1880
    %v1916 = vsel %vm1882, %v1915, %v1914
    %v1917 = vperm.slane %v1826, %v1884
    %v1918 = vsel %vm1886, %v1917, %v1916
    %v1919 = vrot.slane %v1918, 7
    %vm1920 = vcmask 1040384
    %v1921 = vsel %vm1920, %v1887, %v1919
    %v1922 = vlaneseq
    %vm1923 = vcmp.ge.s32.totalorder %v1922, 0
    %vm1924 = vcmp.lt.s32.totalorder %v1922, 256
    %vm1925 = vmand %vm1923, %vm1924
    %1926 = vst.msk [vmem:[#allocation2] sm:$0x3] %vm1925, %v1921
    %v1927 = vmul.f32 %v19, %v19
    %v1928 = vmul.f32 %v20, %v20
    %v1929 = vmul.f32 %v21, %v21
    %v1930 = vmul.f32 %v22, %v22
    %v1931 = vmul.f32 %v23, %v23
    %v1932 = vmul.f32 %v24, %v24
    %v1933 = vmul.f32 %v25, %v25
    %v1934 = vmul.f32 %v26, %v26
    %v1935 = vmul.f32 %v27, %v27
    %v1936 = vmul.f32 %v28, %v28
    %v1937 = vmul.f32 %v29, %v29
    %v1938 = vmul.f32 %v30, %v30
    %v1939 = vmul.f32 %v31, %v31
    %v1940 = vmul.f32 %v32, %v32
    %v1941 = vmul.f32 %v33, %v33
    %v1942 = vmul.f32 %v34, %v34
    %v1943 = vmul.f32 %v35, %v35
    %v1944 = vmul.f32 %v36, %v36
    %v1945 = vmul.f32 %v37, %v37
    %v1946 = vmul.f32 %v38, %v38
    %v1947 = vmul.f32 %v39, %v39
    %v1948 = vmul.f32 %v40, %v40
    %v1949 = vmul.f32 %v41, %v41
    %v1950 = vmul.f32 %v42, %v42
    %v1951 = vmul.f32 %v43, %v43
    %v1952 = vmul.f32 %v44, %v44
    %v1953 = vmul.f32 %v45, %v45
    %v1954 = vmul.f32 %v46, %v46
    %v1955 = vmul.f32 %v47, %v47
    %v1956 = vmul.f32 %v48, %v48
    %v1957 = vmul.f32 %v49, %v49
    %v1958 = vmul.f32 %v50, %v50
    %v1959 = vsel %vm67, %v1927, 0.0
    %1960 = vadd.xlane.f32.xlu0 %v1959
    %v1961 = vpop.xlane.xlu0 %1960
    %v1962 = vsel %vm67, %v1928, 0.0
    %1963 = vadd.xlane.f32.xlu0 %v1962
    %v1964 = vpop.xlane.xlu0 %1963
    %v1965 = vsel %vm67, %v1929, 0.0
    %1966 = vadd.xlane.f32.xlu0 %v1965
    %v1967 = vpop.xlane.xlu0 %1966
    %v1968 = vsel %vm67, %v1930, 0.0
    %1969 = vadd.xlane.f32.xlu0 %v1968
    %v1970 = vpop.xlane.xlu0 %1969
    %v1971 = vsel %vm67, %v1931, 0.0
    %1972 = vadd.xlane.f32.xlu0 %v1971
    %v1973 = vpop.xlane.xlu0 %1972
    %v1974 = vsel %vm67, %v1932, 0.0
    %1975 = vadd.xlane.f32.xlu0 %v1974
    %v1976 = vpop.xlane.xlu0 %1975
    %v1977 = vsel %vm67, %v1933, 0.0
    %1978 = vadd.xlane.f32.xlu0 %v1977
    %v1979 = vpop.xlane.xlu0 %1978
    %v1980 = vsel %vm67, %v1934, 0.0
    %1981 = vadd.xlane.f32.xlu0 %v1980
    %v1982 = vpop.xlane.xlu0 %1981
    %v1983 = vsel %vm67, %v1935, 0.0
    %1984 = vadd.xlane.f32.xlu0 %v1983
    %v1985 = vpop.xlane.xlu0 %1984
    %v1986 = vsel %vm67, %v1936, 0.0
    %1987 = vadd.xlane.f32.xlu0 %v1986
    %v1988 = vpop.xlane.xlu0 %1987
    %v1989 = vsel %vm67, %v1937, 0.0
    %1990 = vadd.xlane.f32.xlu0 %v1989
    %v1991 = vpop.xlane.xlu0 %1990
    %v1992 = vsel %vm67, %v1938, 0.0
    %1993 = vadd.xlane.f32.xlu0 %v1992
    %v1994 = vpop.xlane.xlu0 %1993
    %v1995 = vsel %vm67, %v1939, 0.0
    %1996 = vadd.xlane.f32.xlu0 %v1995
    %v1997 = vpop.xlane.xlu0 %1996
    %v1998 = vsel %vm67, %v1940, 0.0
    %1999 = vadd.xlane.f32.xlu0 %v1998
    %v2000 = vpop.xlane.xlu0 %1999
    %v2001 = vsel %vm67, %v1941, 0.0
    %2002 = vadd.xlane.f32.xlu0 %v2001
    %v2003 = vpop.xlane.xlu0 %2002
    %v2004 = vsel %vm67, %v1942, 0.0
    %2005 = vadd.xlane.f32.xlu0 %v2004
    %v2006 = vpop.xlane.xlu0 %2005
    %v2007 = vsel %vm67, %v1943, 0.0
    %2008 = vadd.xlane.f32.xlu0 %v2007
    %v2009 = vpop.xlane.xlu0 %2008
    %v2010 = vsel %vm67, %v1944, 0.0
    %2011 = vadd.xlane.f32.xlu0 %v2010
    %v2012 = vpop.xlane.xlu0 %2011
    %v2013 = vsel %vm67, %v1945, 0.0
    %2014 = vadd.xlane.f32.xlu0 %v2013
    %v2015 = vpop.xlane.xlu0 %2014
    %v2016 = vsel %vm67, %v1946, 0.0
    %2017 = vadd.xlane.f32.xlu0 %v2016
    %v2018 = vpop.xlane.xlu0 %2017
    %v2019 = vsel %vm67, %v1947, 0.0
    %2020 = vadd.xlane.f32.xlu0 %v2019
    %v2021 = vpop.xlane.xlu0 %2020
    %v2022 = vsel %vm67, %v1948, 0.0
    %2023 = vadd.xlane.f32.xlu0 %v2022
    %v2024 = vpop.xlane.xlu0 %2023
    %v2025 = vsel %vm67, %v1949, 0.0
    %2026 = vadd.xlane.f32.xlu0 %v2025
    %v2027 = vpop.xlane.xlu0 %2026
    %v2028 = vsel %vm67, %v1950, 0.0
    %2029 = vadd.xlane.f32.xlu0 %v2028
    %v2030 = vpop.xlane.xlu0 %2029
    %v2031 = vsel %vm67, %v1951, 0.0
    %2032 = vadd.xlane.f32.xlu0 %v2031
    %v2033 = vpop.xlane.xlu0 %2032
    %v2034 = vsel %vm67, %v1952, 0.0
    %2035 = vadd.xlane.f32.xlu0 %v2034
    %v2036 = vpop.xlane.xlu0 %2035
    %v2037 = vsel %vm67, %v1953, 0.0
    %2038 = vadd.xlane.f32.xlu0 %v2037
    %v2039 = vpop.xlane.xlu0 %2038
    %v2040 = vsel %vm67, %v1954, 0.0
    %2041 = vadd.xlane.f32.xlu0 %v2040
    %v2042 = vpop.xlane.xlu0 %2041
    %v2043 = vsel %vm67, %v1955, 0.0
    %2044 = vadd.xlane.f32.xlu0 %v2043
    %v2045 = vpop.xlane.xlu0 %2044
    %v2046 = vsel %vm67, %v1956, 0.0
    %2047 = vadd.xlane.f32.xlu0 %v2046
    %v2048 = vpop.xlane.xlu0 %2047
    %v2049 = vsel %vm67, %v1957, 0.0
    %2050 = vadd.xlane.f32.xlu0 %v2049
    %v2051 = vpop.xlane.xlu0 %2050
    %v2052 = vsel %vm67, %v1958, 0.0
    %2053 = vadd.xlane.f32.xlu0 %v2052
    %v2054 = vpop.xlane.xlu0 %2053
    %v2055 = vmul.f32 %v362, 2.0
    %v2056 = vmul.f32 %v364, 2.0
    %v2057 = vmul.f32 %v366, 2.0
    %v2058 = vmul.f32 %v368, 2.0
    %v2059 = vmul.f32 %v370, 2.0
    %v2060 = vmul.f32 %v372, 2.0
    %v2061 = vmul.f32 %v374, 2.0
    %v2062 = vmul.f32 %v376, 2.0
    %v2063 = vmul.f32 %v378, 2.0
    %v2064 = vmul.f32 %v380, 2.0
    %v2065 = vmul.f32 %v382, 2.0
    %v2066 = vmul.f32 %v384, 2.0
    %v2067 = vmul.f32 %v386, 2.0
    %v2068 = vmul.f32 %v388, 2.0
    %v2069 = vmul.f32 %v390, 2.0
    %v2070 = vmul.f32 %v392, 2.0
    %v2071 = vmul.f32 %v394, 2.0
    %v2072 = vmul.f32 %v396, 2.0
    %v2073 = vmul.f32 %v398, 2.0
    %v2074 = vmul.f32 %v400, 2.0
    %v2075 = vmul.f32 %v402, 2.0
    %v2076 = vmul.f32 %v404, 2.0
    %v2077 = vmul.f32 %v406, 2.0
    %v2078 = vmul.f32 %v408, 2.0
    %v2079 = vmul.f32 %v410, 2.0
    %v2080 = vmul.f32 %v412, 2.0
    %v2081 = vmul.f32 %v414, 2.0
    %v2082 = vmul.f32 %v416, 2.0
    %v2083 = vmul.f32 %v418, 2.0
    %v2084 = vmul.f32 %v420, 2.0
    %v2085 = vmul.f32 %v422, 2.0
    %v2086 = vmul.f32 %v424, 2.0
    %v2087 = vadd.f32 %v1961, %v2055
    %v2088 = vadd.f32 %v1964, %v2056
    %v2089 = vadd.f32 %v1967, %v2057
    %v2090 = vadd.f32 %v1970, %v2058
    %v2091 = vadd.f32 %v1973, %v2059
    %v2092 = vadd.f32 %v1976, %v2060
    %v2093 = vadd.f32 %v1979, %v2061
    %v2094 = vadd.f32 %v1982, %v2062
    %v2095 = vadd.f32 %v1985, %v2063
    %v2096 = vadd.f32 %v1988, %v2064
    %v2097 = vadd.f32 %v1991, %v2065
    %v2098 = vadd.f32 %v1994, %v2066
    %v2099 = vadd.f32 %v1997, %v2067
    %v2100 = vadd.f32 %v2000, %v2068
    %v2101 = vadd.f32 %v2003, %v2069
    %v2102 = vadd.f32 %v2006, %v2070
    %v2103 = vadd.f32 %v2009, %v2071
    %v2104 = vadd.f32 %v2012, %v2072
    %v2105 = vadd.f32 %v2015, %v2073
    %v2106 = vadd.f32 %v2018, %v2074
    %v2107 = vadd.f32 %v2021, %v2075
    %v2108 = vadd.f32 %v2024, %v2076
    %v2109 = vadd.f32 %v2027, %v2077
    %v2110 = vadd.f32 %v2030, %v2078
    %v2111 = vadd.f32 %v2033, %v2079
    %v2112 = vadd.f32 %v2036, %v2080
    %v2113 = vadd.f32 %v2039, %v2081
    %v2114 = vadd.f32 %v2042, %v2082
    %v2115 = vadd.f32 %v2045, %v2083
    %v2116 = vadd.f32 %v2048, %v2084
    %v2117 = vadd.f32 %v2051, %v2085
    %v2118 = vadd.f32 %v2054, %v2086
    %v2151 = vperm.slane %v2087, 0
    %v2152 = vperm.slane %v2087, 1
    %v2153 = vperm.slane %v2087, 2
    %v2154 = vperm.slane %v2087, 3
    %v2155 = vperm.slane %v2087, 4
    %v2156 = vperm.slane %v2087, 5
    %v2157 = vperm.slane %v2087, 6
    %v2158 = vperm.slane %v2087, 7
    %v2159 = vperm.slane %v2088, 0
    %v2160 = vperm.slane %v2088, 1
    %v2161 = vperm.slane %v2088, 2
    %v2162 = vperm.slane %v2088, 3
    %v2163 = vperm.slane %v2088, 4
    %v2164 = vperm.slane %v2088, 5
    %v2165 = vperm.slane %v2088, 6
    %v2166 = vperm.slane %v2088, 7
    %v2167 = vperm.slane %v2089, 0
    %v2168 = vperm.slane %v2089, 1
    %v2169 = vperm.slane %v2089, 2
    %v2170 = vperm.slane %v2089, 3
    %v2171 = vperm.slane %v2089, 4
    %v2172 = vperm.slane %v2089, 5
    %v2173 = vperm.slane %v2089, 6
    %v2174 = vperm.slane %v2089, 7
    %v2175 = vperm.slane %v2090, 0
    %v2176 = vperm.slane %v2090, 1
    %v2177 = vperm.slane %v2090, 2
    %v2178 = vperm.slane %v2090, 3
    %v2179 = vperm.slane %v2090, 4
    %v2180 = vperm.slane %v2090, 5
    %v2181 = vperm.slane %v2090, 6
    %v2182 = vperm.slane %v2090, 7
    %v2183 = vperm.slane %v2091, 0
    %v2184 = vperm.slane %v2091, 1
    %v2185 = vperm.slane %v2091, 2
    %v2186 = vperm.slane %v2091, 3
    %v2187 = vperm.slane %v2091, 4
    %v2188 = vperm.slane %v2091, 5
    %v2189 = vperm.slane %v2091, 6
    %v2190 = vperm.slane %v2091, 7
    %v2191 = vperm.slane %v2092, 0
    %v2192 = vperm.slane %v2092, 1
    %v2193 = vperm.slane %v2092, 2
    %v2194 = vperm.slane %v2092, 3
    %v2195 = vperm.slane %v2092, 4
    %v2196 = vperm.slane %v2092, 5
    %v2197 = vperm.slane %v2092, 6
    %v2198 = vperm.slane %v2092, 7
    %v2199 = vperm.slane %v2093, 0
    %v2200 = vperm.slane %v2093, 1
    %v2201 = vperm.slane %v2093, 2
    %v2202 = vperm.slane %v2093, 3
    %v2203 = vperm.slane %v2093, 4
    %v2204 = vperm.slane %v2093, 5
    %v2205 = vperm.slane %v2093, 6
    %v2206 = vperm.slane %v2093, 7
    %v2207 = vperm.slane %v2094, 0
    %v2208 = vperm.slane %v2094, 1
    %v2209 = vperm.slane %v2094, 2
    %v2210 = vperm.slane %v2094, 3
    %v2211 = vperm.slane %v2094, 4
    %v2212 = vperm.slane %v2094, 5
    %v2213 = vperm.slane %v2094, 6
    %v2214 = vperm.slane %v2094, 7
    %v2215 = vperm.slane %v2095, 0
    %v2216 = vperm.slane %v2095, 1
    %v2217 = vperm.slane %v2095, 2
    %v2218 = vperm.slane %v2095, 3
    %v2219 = vperm.slane %v2095, 4
    %v2220 = vperm.slane %v2095, 5
    %v2221 = vperm.slane %v2095, 6
    %v2222 = vperm.slane %v2095, 7
    %v2223 = vperm.slane %v2096, 0
    %v2224 = vperm.slane %v2096, 1
    %v2225 = vperm.slane %v2096, 2
    %v2226 = vperm.slane %v2096, 3
    %v2227 = vperm.slane %v2096, 4
    %v2228 = vperm.slane %v2096, 5
    %v2229 = vperm.slane %v2096, 6
    %v2230 = vperm.slane %v2096, 7
    %v2231 = vperm.slane %v2097, 0
    %v2232 = vperm.slane %v2097, 1
    %v2233 = vperm.slane %v2097, 2
    %v2234 = vperm.slane %v2097, 3
    %v2235 = vperm.slane %v2097, 4
    %v2236 = vperm.slane %v2097, 5
    %v2237 = vperm.slane %v2097, 6
    %v2238 = vperm.slane %v2097, 7
    %v2239 = vperm.slane %v2098, 0
    %v2240 = vperm.slane %v2098, 1
    %v2241 = vperm.slane %v2098, 2
    %v2242 = vperm.slane %v2098, 3
    %v2243 = vperm.slane %v2098, 4
    %v2244 = vperm.slane %v2098, 5
    %v2245 = vperm.slane %v2098, 6
    %v2246 = vperm.slane %v2098, 7
    %v2247 = vperm.slane %v2099, 0
    %v2248 = vperm.slane %v2099, 1
    %v2249 = vperm.slane %v2099, 2
    %v2250 = vperm.slane %v2099, 3
    %v2251 = vperm.slane %v2099, 4
    %v2252 = vperm.slane %v2099, 5
    %v2253 = vperm.slane %v2099, 6
    %v2254 = vperm.slane %v2099, 7
    %v2255 = vperm.slane %v2100, 0
    %v2256 = vperm.slane %v2100, 1
    %v2257 = vperm.slane %v2100, 2
    %v2258 = vperm.slane %v2100, 3
    %v2259 = vperm.slane %v2100, 4
    %v2260 = vperm.slane %v2100, 5
    %v2261 = vperm.slane %v2100, 6
    %v2262 = vperm.slane %v2100, 7
    %v2263 = vperm.slane %v2101, 0
    %v2264 = vperm.slane %v2101, 1
    %v2265 = vperm.slane %v2101, 2
    %v2266 = vperm.slane %v2101, 3
    %v2267 = vperm.slane %v2101, 4
    %v2268 = vperm.slane %v2101, 5
    %v2269 = vperm.slane %v2101, 6
    %v2270 = vperm.slane %v2101, 7
    %v2271 = vperm.slane %v2102, 0
    %v2272 = vperm.slane %v2102, 1
    %v2273 = vperm.slane %v2102, 2
    %v2274 = vperm.slane %v2102, 3
    %v2275 = vperm.slane %v2102, 4
    %v2276 = vperm.slane %v2102, 5
    %v2277 = vperm.slane %v2102, 6
    %v2278 = vperm.slane %v2102, 7
    %v2279 = vperm.slane %v2103, 0
    %v2280 = vperm.slane %v2103, 1
    %v2281 = vperm.slane %v2103, 2
    %v2282 = vperm.slane %v2103, 3
    %v2283 = vperm.slane %v2103, 4
    %v2284 = vperm.slane %v2103, 5
    %v2285 = vperm.slane %v2103, 6
    %v2286 = vperm.slane %v2103, 7
    %v2287 = vperm.slane %v2104, 0
    %v2288 = vperm.slane %v2104, 1
    %v2289 = vperm.slane %v2104, 2
    %v2290 = vperm.slane %v2104, 3
    %v2291 = vperm.slane %v2104, 4
    %v2292 = vperm.slane %v2104, 5
    %v2293 = vperm.slane %v2104, 6
    %v2294 = vperm.slane %v2104, 7
    %v2295 = vperm.slane %v2105, 0
    %v2296 = vperm.slane %v2105, 1
    %v2297 = vperm.slane %v2105, 2
    %v2298 = vperm.slane %v2105, 3
    %v2299 = vperm.slane %v2105, 4
    %v2300 = vperm.slane %v2105, 5
    %v2301 = vperm.slane %v2105, 6
    %v2302 = vperm.slane %v2105, 7
    %v2303 = vperm.slane %v2106, 0
    %v2304 = vperm.slane %v2106, 1
    %v2305 = vperm.slane %v2106, 2
    %v2306 = vperm.slane %v2106, 3
    %v2307 = vperm.slane %v2106, 4
    %v2308 = vperm.slane %v2106, 5
    %v2309 = vperm.slane %v2106, 6
    %v2310 = vperm.slane %v2106, 7
    %v2311 = vperm.slane %v2107, 0
    %v2312 = vperm.slane %v2107, 1
    %v2313 = vperm.slane %v2107, 2
    %v2314 = vperm.slane %v2107, 3
    %v2315 = vperm.slane %v2107, 4
    %v2316 = vperm.slane %v2107, 5
    %v2317 = vperm.slane %v2107, 6
    %v2318 = vperm.slane %v2107, 7
    %v2319 = vperm.slane %v2108, 0
    %v2320 = vperm.slane %v2108, 1
    %v2321 = vperm.slane %v2108, 2
    %v2322 = vperm.slane %v2108, 3
    %v2323 = vperm.slane %v2108, 4
    %v2324 = vperm.slane %v2108, 5
    %v2325 = vperm.slane %v2108, 6
    %v2326 = vperm.slane %v2108, 7
    %v2327 = vperm.slane %v2109, 0
    %v2328 = vperm.slane %v2109, 1
    %v2329 = vperm.slane %v2109, 2
    %v2330 = vperm.slane %v2109, 3
    %v2331 = vperm.slane %v2109, 4
    %v2332 = vperm.slane %v2109, 5
    %v2333 = vperm.slane %v2109, 6
    %v2334 = vperm.slane %v2109, 7
    %v2335 = vperm.slane %v2110, 0
    %v2336 = vperm.slane %v2110, 1
    %v2337 = vperm.slane %v2110, 2
    %v2338 = vperm.slane %v2110, 3
    %v2339 = vperm.slane %v2110, 4
    %v2340 = vperm.slane %v2110, 5
    %v2341 = vperm.slane %v2110, 6
    %v2342 = vperm.slane %v2110, 7
    %v2343 = vperm.slane %v2111, 0
    %v2344 = vperm.slane %v2111, 1
    %v2345 = vperm.slane %v2111, 2
    %v2346 = vperm.slane %v2111, 3
    %v2347 = vperm.slane %v2111, 4
    %v2348 = vperm.slane %v2111, 5
    %v2349 = vperm.slane %v2111, 6
    %v2350 = vperm.slane %v2111, 7
    %v2351 = vperm.slane %v2112, 0
    %v2352 = vperm.slane %v2112, 1
    %v2353 = vperm.slane %v2112, 2
    %v2354 = vperm.slane %v2112, 3
    %v2355 = vperm.slane %v2112, 4
    %v2356 = vperm.slane %v2112, 5
    %v2357 = vperm.slane %v2112, 6
    %v2358 = vperm.slane %v2112, 7
    %v2359 = vperm.slane %v2113, 0
    %v2360 = vperm.slane %v2113, 1
    %v2361 = vperm.slane %v2113, 2
    %v2362 = vperm.slane %v2113, 3
    %v2363 = vperm.slane %v2113, 4
    %v2364 = vperm.slane %v2113, 5
    %v2365 = vperm.slane %v2113, 6
    %v2366 = vperm.slane %v2113, 7
    %v2367 = vperm.slane %v2114, 0
    %v2368 = vperm.slane %v2114, 1
    %v2369 = vperm.slane %v2114, 2
    %v2370 = vperm.slane %v2114, 3
    %v2371 = vperm.slane %v2114, 4
    %v2372 = vperm.slane %v2114, 5
    %v2373 = vperm.slane %v2114, 6
    %v2374 = vperm.slane %v2114, 7
    %v2375 = vperm.slane %v2115, 0
    %v2376 = vperm.slane %v2115, 1
    %v2377 = vperm.slane %v2115, 2
    %v2378 = vperm.slane %v2115, 3
    %v2379 = vperm.slane %v2115, 4
    %v2380 = vperm.slane %v2115, 5
    %v2381 = vperm.slane %v2115, 6
    %v2382 = vperm.slane %v2115, 7
    %v2383 = vperm.slane %v2116, 0
    %v2384 = vperm.slane %v2116, 1
    %v2385 = vperm.slane %v2116, 2
    %v2386 = vperm.slane %v2116, 3
    %v2387 = vperm.slane %v2116, 4
    %v2388 = vperm.slane %v2116, 5
    %v2389 = vperm.slane %v2116, 6
    %v2390 = vperm.slane %v2116, 7
    %v2391 = vperm.slane %v2117, 0
    %v2392 = vperm.slane %v2117, 1
    %v2393 = vperm.slane %v2117, 2
    %v2394 = vperm.slane %v2117, 3
    %v2395 = vperm.slane %v2117, 4
    %v2396 = vperm.slane %v2117, 5
    %v2397 = vperm.slane %v2117, 6
    %v2398 = vperm.slane %v2117, 7
    %v2399 = vperm.slane %v2118, 0
    %v2400 = vperm.slane %v2118, 1
    %v2401 = vperm.slane %v2118, 2
    %v2402 = vperm.slane %v2118, 3
    %v2403 = vperm.slane %v2118, 4
    %v2404 = vperm.slane %v2118, 5
    %v2405 = vperm.slane %v2118, 6
    %v2406 = vperm.slane %v2118, 7
    %2407 = vst [vmem:[#allocation1] ss:$9 sm:$0xff] %v2151
    %s2408 = scalar_lea.vmem [#allocation1], 1
    %2409 = vst [vmem:[%s2408] ss:$9 sm:$0xff] %v2152
    %s2410 = scalar_lea.vmem [#allocation1], 2
    %2411 = vst [vmem:[%s2410] ss:$9 sm:$0xff] %v2153
    %s2412 = scalar_lea.vmem [#allocation1], 3
    %2413 = vst [vmem:[%s2412] ss:$9 sm:$0xff] %v2154
    %s2414 = scalar_lea.vmem [#allocation1], 4
    %2415 = vst [vmem:[%s2414] ss:$9 sm:$0xff] %v2155
    %s2416 = scalar_lea.vmem [#allocation1], 5
    %2417 = vst [vmem:[%s2416] ss:$9 sm:$0xff] %v2156
    %s2418 = scalar_lea.vmem [#allocation1], 6
    %2419 = vst [vmem:[%s2418] ss:$9 sm:$0xff] %v2157
    %s2420 = scalar_lea.vmem [#allocation1], 7
    %2421 = vst [vmem:[%s2420] ss:$9 sm:$0xff] %v2158
    %v2422 = vld [vmem:[#allocation1] sm:$0xff]
    %2423 = vst [vmem:[#allocation1] ss:$9 sm:$0xff] %v2159
    %2424 = vst [vmem:[%s2408] ss:$9 sm:$0xff] %v2160
    %2425 = vst [vmem:[%s2410] ss:$9 sm:$0xff] %v2161
    %2426 = vst [vmem:[%s2412] ss:$9 sm:$0xff] %v2162
    %2427 = vst [vmem:[%s2414] ss:$9 sm:$0xff] %v2163
    %2428 = vst [vmem:[%s2416] ss:$9 sm:$0xff] %v2164
    %2429 = vst [vmem:[%s2418] ss:$9 sm:$0xff] %v2165
    %2430 = vst [vmem:[%s2420] ss:$9 sm:$0xff] %v2166
    %v2431 = vld [vmem:[#allocation1] sm:$0xff]
    %2432 = vst [vmem:[#allocation1] ss:$9 sm:$0xff] %v2167
    %2433 = vst [vmem:[%s2408] ss:$9 sm:$0xff] %v2168
    %2434 = vst [vmem:[%s2410] ss:$9 sm:$0xff] %v2169
    %2435 = vst [vmem:[%s2412] ss:$9 sm:$0xff] %v2170
    %2436 = vst [vmem:[%s2414] ss:$9 sm:$0xff] %v2171
    %2437 = vst [vmem:[%s2416] ss:$9 sm:$0xff] %v2172
    %2438 = vst [vmem:[%s2418] ss:$9 sm:$0xff] %v2173
    %2439 = vst [vmem:[%s2420] ss:$9 sm:$0xff] %v2174
    %v2440 = vld [vmem:[#allocation1] sm:$0xff]
    %2441 = vst [vmem:[#allocation1] ss:$9 sm:$0xff] %v2175
    %2442 = vst [vmem:[%s2408] ss:$9 sm:$0xff] %v2176
    %2443 = vst [vmem:[%s2410] ss:$9 sm:$0xff] %v2177
    %2444 = vst [vmem:[%s2412] ss:$9 sm:$0xff] %v2178
    %2445 = vst [vmem:[%s2414] ss:$9 sm:$0xff] %v2179
    %2446 = vst [vmem:[%s2416] ss:$9 sm:$0xff] %v2180
    %2447 = vst [vmem:[%s2418] ss:$9 sm:$0xff] %v2181
    %2448 = vst [vmem:[%s2420] ss:$9 sm:$0xff] %v2182
    %v2449 = vld [vmem:[#allocation1] sm:$0xff]
    %2450 = vst [vmem:[#allocation1] ss:$9 sm:$0xff] %v2183
    %2451 = vst [vmem:[%s2408] ss:$9 sm:$0xff] %v2184
    %2452 = vst [vmem:[%s2410] ss:$9 sm:$0xff] %v2185
    %2453 = vst [vmem:[%s2412] ss:$9 sm:$0xff] %v2186
    %2454 = vst [vmem:[%s2414] ss:$9 sm:$0xff] %v2187
    %2455 = vst [vmem:[%s2416] ss:$9 sm:$0xff] %v2188
    %2456 = vst [vmem:[%s2418] ss:$9 sm:$0xff] %v2189
    %2457 = vst [vmem:[%s2420] ss:$9 sm:$0xff] %v2190
    %v2458 = vld [vmem:[#allocation1] sm:$0xff]
    %2459 = vst [vmem:[#allocation1] ss:$9 sm:$0xff] %v2191
    %2460 = vst [vmem:[%s2408] ss:$9 sm:$0xff] %v2192
    %2461 = vst [vmem:[%s2410] ss:$9 sm:$0xff] %v2193
    %2462 = vst [vmem:[%s2412] ss:$9 sm:$0xff] %v2194
    %2463 = vst [vmem:[%s2414] ss:$9 sm:$0xff] %v2195
    %2464 = vst [vmem:[%s2416] ss:$9 sm:$0xff] %v2196
    %2465 = vst [vmem:[%s2418] ss:$9 sm:$0xff] %v2197
    %2466 = vst [vmem:[%s2420] ss:$9 sm:$0xff] %v2198
    %v2467 = vld [vmem:[#allocation1] sm:$0xff]
    %2468 = vst [vmem:[#allocation1] ss:$9 sm:$0xff] %v2199
    %2469 = vst [vmem:[%s2408] ss:$9 sm:$0xff] %v2200
    %2470 = vst [vmem:[%s2410] ss:$9 sm:$0xff] %v2201
    %2471 = vst [vmem:[%s2412] ss:$9 sm:$0xff] %v2202
    %2472 = vst [vmem:[%s2414] ss:$9 sm:$0xff] %v2203
    %2473 = vst [vmem:[%s2416] ss:$9 sm:$0xff] %v2204
    %2474 = vst [vmem:[%s2418] ss:$9 sm:$0xff] %v2205
    %2475 = vst [vmem:[%s2420] ss:$9 sm:$0xff] %v2206
    %v2476 = vld [vmem:[#allocation1] sm:$0xff]
    %2477 = vst [vmem:[#allocation1] ss:$9 sm:$0xff] %v2207
    %2478 = vst [vmem:[%s2408] ss:$9 sm:$0xff] %v2208
    %2479 = vst [vmem:[%s2410] ss:$9 sm:$0xff] %v2209
    %2480 = vst [vmem:[%s2412] ss:$9 sm:$0xff] %v2210
    %2481 = vst [vmem:[%s2414] ss:$9 sm:$0xff] %v2211
    %2482 = vst [vmem:[%s2416] ss:$9 sm:$0xff] %v2212
    %2483 = vst [vmem:[%s2418] ss:$9 sm:$0xff] %v2213
    %2484 = vst [vmem:[%s2420] ss:$9 sm:$0xff] %v2214
    %v2485 = vld [vmem:[#allocation1] sm:$0xff]
    %2486 = vst [vmem:[#allocation1] ss:$9 sm:$0xff] %v2215
    %2487 = vst [vmem:[%s2408] ss:$9 sm:$0xff] %v2216
    %2488 = vst [vmem:[%s2410] ss:$9 sm:$0xff] %v2217
    %2489 = vst [vmem:[%s2412] ss:$9 sm:$0xff] %v2218
    %2490 = vst [vmem:[%s2414] ss:$9 sm:$0xff] %v2219
    %2491 = vst [vmem:[%s2416] ss:$9 sm:$0xff] %v2220
    %2492 = vst [vmem:[%s2418] ss:$9 sm:$0xff] %v2221
    %2493 = vst [vmem:[%s2420] ss:$9 sm:$0xff] %v2222
    %v2494 = vld [vmem:[#allocation1] sm:$0xff]
    %2495 = vst [vmem:[#allocation1] ss:$9 sm:$0xff] %v2223
    %2496 = vst [vmem:[%s2408] ss:$9 sm:$0xff] %v2224
    %2497 = vst [vmem:[%s2410] ss:$9 sm:$0xff] %v2225
    %2498 = vst [vmem:[%s2412] ss:$9 sm:$0xff] %v2226
    %2499 = vst [vmem:[%s2414] ss:$9 sm:$0xff] %v2227
    %2500 = vst [vmem:[%s2416] ss:$9 sm:$0xff] %v2228
    %2501 = vst [vmem:[%s2418] ss:$9 sm:$0xff] %v2229
    %2502 = vst [vmem:[%s2420] ss:$9 sm:$0xff] %v2230
    %v2503 = vld [vmem:[#allocation1] sm:$0xff]
    %2504 = vst [vmem:[#allocation1] ss:$9 sm:$0xff] %v2231
    %2505 = vst [vmem:[%s2408] ss:$9 sm:$0xff] %v2232
    %2506 = vst [vmem:[%s2410] ss:$9 sm:$0xff] %v2233
    %2507 = vst [vmem:[%s2412] ss:$9 sm:$0xff] %v2234
    %2508 = vst [vmem:[%s2414] ss:$9 sm:$0xff] %v2235
    %2509 = vst [vmem:[%s2416] ss:$9 sm:$0xff] %v2236
    %2510 = vst [vmem:[%s2418] ss:$9 sm:$0xff] %v2237
    %2511 = vst [vmem:[%s2420] ss:$9 sm:$0xff] %v2238
    %v2512 = vld [vmem:[#allocation1] sm:$0xff]
    %2513 = vst [vmem:[#allocation1] ss:$9 sm:$0xff] %v2239
    %2514 = vst [vmem:[%s2408] ss:$9 sm:$0xff] %v2240
    %2515 = vst [vmem:[%s2410] ss:$9 sm:$0xff] %v2241
    %2516 = vst [vmem:[%s2412] ss:$9 sm:$0xff] %v2242
    %2517 = vst [vmem:[%s2414] ss:$9 sm:$0xff] %v2243
    %2518 = vst [vmem:[%s2416] ss:$9 sm:$0xff] %v2244
    %2519 = vst [vmem:[%s2418] ss:$9 sm:$0xff] %v2245
    %2520 = vst [vmem:[%s2420] ss:$9 sm:$0xff] %v2246
    %v2521 = vld [vmem:[#allocation1] sm:$0xff]
    %2522 = vst [vmem:[#allocation1] ss:$9 sm:$0xff] %v2247
    %2523 = vst [vmem:[%s2408] ss:$9 sm:$0xff] %v2248
    %2524 = vst [vmem:[%s2410] ss:$9 sm:$0xff] %v2249
    %2525 = vst [vmem:[%s2412] ss:$9 sm:$0xff] %v2250
    %2526 = vst [vmem:[%s2414] ss:$9 sm:$0xff] %v2251
    %2527 = vst [vmem:[%s2416] ss:$9 sm:$0xff] %v2252
    %2528 = vst [vmem:[%s2418] ss:$9 sm:$0xff] %v2253
    %2529 = vst [vmem:[%s2420] ss:$9 sm:$0xff] %v2254
    %v2530 = vld [vmem:[#allocation1] sm:$0xff]
    %2531 = vst [vmem:[#allocation1] ss:$9 sm:$0xff] %v2255
    %2532 = vst [vmem:[%s2408] ss:$9 sm:$0xff] %v2256
    %2533 = vst [vmem:[%s2410] ss:$9 sm:$0xff] %v2257
    %2534 = vst [vmem:[%s2412] ss:$9 sm:$0xff] %v2258
    %2535 = vst [vmem:[%s2414] ss:$9 sm:$0xff] %v2259
    %2536 = vst [vmem:[%s2416] ss:$9 sm:$0xff] %v2260
    %2537 = vst [vmem:[%s2418] ss:$9 sm:$0xff] %v2261
    %2538 = vst [vmem:[%s2420] ss:$9 sm:$0xff] %v2262
    %v2539 = vld [vmem:[#allocation1] sm:$0xff]
    %2540 = vst [vmem:[#allocation1] ss:$9 sm:$0xff] %v2263
    %2541 = vst [vmem:[%s2408] ss:$9 sm:$0xff] %v2264
    %2542 = vst [vmem:[%s2410] ss:$9 sm:$0xff] %v2265
    %2543 = vst [vmem:[%s2412] ss:$9 sm:$0xff] %v2266
    %2544 = vst [vmem:[%s2414] ss:$9 sm:$0xff] %v2267
    %2545 = vst [vmem:[%s2416] ss:$9 sm:$0xff] %v2268
    %2546 = vst [vmem:[%s2418] ss:$9 sm:$0xff] %v2269
    %2547 = vst [vmem:[%s2420] ss:$9 sm:$0xff] %v2270
    %v2548 = vld [vmem:[#allocation1] sm:$0xff]
    %2549 = vst [vmem:[#allocation1] ss:$9 sm:$0xff] %v2271
    %2550 = vst [vmem:[%s2408] ss:$9 sm:$0xff] %v2272
    %2551 = vst [vmem:[%s2410] ss:$9 sm:$0xff] %v2273
    %2552 = vst [vmem:[%s2412] ss:$9 sm:$0xff] %v2274
    %2553 = vst [vmem:[%s2414] ss:$9 sm:$0xff] %v2275
    %2554 = vst [vmem:[%s2416] ss:$9 sm:$0xff] %v2276
    %2555 = vst [vmem:[%s2418] ss:$9 sm:$0xff] %v2277
    %2556 = vst [vmem:[%s2420] ss:$9 sm:$0xff] %v2278
    %v2557 = vld [vmem:[#allocation1] sm:$0xff]
    %2558 = vst [vmem:[#allocation1] ss:$9 sm:$0xff] %v2279
    %2559 = vst [vmem:[%s2408] ss:$9 sm:$0xff] %v2280
    %2560 = vst [vmem:[%s2410] ss:$9 sm:$0xff] %v2281
    %2561 = vst [vmem:[%s2412] ss:$9 sm:$0xff] %v2282
    %2562 = vst [vmem:[%s2414] ss:$9 sm:$0xff] %v2283
    %2563 = vst [vmem:[%s2416] ss:$9 sm:$0xff] %v2284
    %2564 = vst [vmem:[%s2418] ss:$9 sm:$0xff] %v2285
    %2565 = vst [vmem:[%s2420] ss:$9 sm:$0xff] %v2286
    %v2566 = vld [vmem:[#allocation1] sm:$0xff]
    %2567 = vst [vmem:[#allocation1] ss:$9 sm:$0xff] %v2287
    %2568 = vst [vmem:[%s2408] ss:$9 sm:$0xff] %v2288
    %2569 = vst [vmem:[%s2410] ss:$9 sm:$0xff] %v2289
    %2570 = vst [vmem:[%s2412] ss:$9 sm:$0xff] %v2290
    %2571 = vst [vmem:[%s2414] ss:$9 sm:$0xff] %v2291
    %2572 = vst [vmem:[%s2416] ss:$9 sm:$0xff] %v2292
    %2573 = vst [vmem:[%s2418] ss:$9 sm:$0xff] %v2293
    %2574 = vst [vmem:[%s2420] ss:$9 sm:$0xff] %v2294
    %v2575 = vld [vmem:[#allocation1] sm:$0xff]
    %2576 = vst [vmem:[#allocation1] ss:$9 sm:$0xff] %v2295
    %2577 = vst [vmem:[%s2408] ss:$9 sm:$0xff] %v2296
    %2578 = vst [vmem:[%s2410] ss:$9 sm:$0xff] %v2297
    %2579 = vst [vmem:[%s2412] ss:$9 sm:$0xff] %v2298
    %2580 = vst [vmem:[%s2414] ss:$9 sm:$0xff] %v2299
    %2581 = vst [vmem:[%s2416] ss:$9 sm:$0xff] %v2300
    %2582 = vst [vmem:[%s2418] ss:$9 sm:$0xff] %v2301
    %2583 = vst [vmem:[%s2420] ss:$9 sm:$0xff] %v2302
    %v2584 = vld [vmem:[#allocation1] sm:$0xff]
    %2585 = vst [vmem:[#allocation1] ss:$9 sm:$0xff] %v2303
    %2586 = vst [vmem:[%s2408] ss:$9 sm:$0xff] %v2304
    %2587 = vst [vmem:[%s2410] ss:$9 sm:$0xff] %v2305
    %2588 = vst [vmem:[%s2412] ss:$9 sm:$0xff] %v2306
    %2589 = vst [vmem:[%s2414] ss:$9 sm:$0xff] %v2307
    %2590 = vst [vmem:[%s2416] ss:$9 sm:$0xff] %v2308
    %2591 = vst [vmem:[%s2418] ss:$9 sm:$0xff] %v2309
    %2592 = vst [vmem:[%s2420] ss:$9 sm:$0xff] %v2310
    %v2593 = vld [vmem:[#allocation1] sm:$0xff]
    %2594 = vst [vmem:[#allocation1] ss:$9 sm:$0xff] %v2311
    %2595 = vst [vmem:[%s2408] ss:$9 sm:$0xff] %v2312
    %2596 = vst [vmem:[%s2410] ss:$9 sm:$0xff] %v2313
    %2597 = vst [vmem:[%s2412] ss:$9 sm:$0xff] %v2314
    %2598 = vst [vmem:[%s2414] ss:$9 sm:$0xff] %v2315
    %2599 = vst [vmem:[%s2416] ss:$9 sm:$0xff] %v2316
    %2600 = vst [vmem:[%s2418] ss:$9 sm:$0xff] %v2317
    %2601 = vst [vmem:[%s2420] ss:$9 sm:$0xff] %v2318
    %v2602 = vld [vmem:[#allocation1] sm:$0xff]
    %2603 = vst [vmem:[#allocation1] ss:$9 sm:$0xff] %v2319
    %2604 = vst [vmem:[%s2408] ss:$9 sm:$0xff] %v2320
    %2605 = vst [vmem:[%s2410] ss:$9 sm:$0xff] %v2321
    %2606 = vst [vmem:[%s2412] ss:$9 sm:$0xff] %v2322
    %2607 = vst [vmem:[%s2414] ss:$9 sm:$0xff] %v2323
    %2608 = vst [vmem:[%s2416] ss:$9 sm:$0xff] %v2324
    %2609 = vst [vmem:[%s2418] ss:$9 sm:$0xff] %v2325
    %2610 = vst [vmem:[%s2420] ss:$9 sm:$0xff] %v2326
    %v2611 = vld [vmem:[#allocation1] sm:$0xff]
    %2612 = vst [vmem:[#allocation1] ss:$9 sm:$0xff] %v2327
    %2613 = vst [vmem:[%s2408] ss:$9 sm:$0xff] %v2328
    %2614 = vst [vmem:[%s2410] ss:$9 sm:$0xff] %v2329
    %2615 = vst [vmem:[%s2412] ss:$9 sm:$0xff] %v2330
    %2616 = vst [vmem:[%s2414] ss:$9 sm:$0xff] %v2331
    %2617 = vst [vmem:[%s2416] ss:$9 sm:$0xff] %v2332
    %2618 = vst [vmem:[%s2418] ss:$9 sm:$0xff] %v2333
    %2619 = vst [vmem:[%s2420] ss:$9 sm:$0xff] %v2334
    %v2620 = vld [vmem:[#allocation1] sm:$0xff]
    %2621 = vst [vmem:[#allocation1] ss:$9 sm:$0xff] %v2335
    %2622 = vst [vmem:[%s2408] ss:$9 sm:$0xff] %v2336
    %2623 = vst [vmem:[%s2410] ss:$9 sm:$0xff] %v2337
    %2624 = vst [vmem:[%s2412] ss:$9 sm:$0xff] %v2338
    %2625 = vst [vmem:[%s2414] ss:$9 sm:$0xff] %v2339
    %2626 = vst [vmem:[%s2416] ss:$9 sm:$0xff] %v2340
    %2627 = vst [vmem:[%s2418] ss:$9 sm:$0xff] %v2341
    %2628 = vst [vmem:[%s2420] ss:$9 sm:$0xff] %v2342
    %v2629 = vld [vmem:[#allocation1] sm:$0xff]
    %2630 = vst [vmem:[#allocation1] ss:$9 sm:$0xff] %v2343
    %2631 = vst [vmem:[%s2408] ss:$9 sm:$0xff] %v2344
    %2632 = vst [vmem:[%s2410] ss:$9 sm:$0xff] %v2345
    %2633 = vst [vmem:[%s2412] ss:$9 sm:$0xff] %v2346
    %2634 = vst [vmem:[%s2414] ss:$9 sm:$0xff] %v2347
    %2635 = vst [vmem:[%s2416] ss:$9 sm:$0xff] %v2348
    %2636 = vst [vmem:[%s2418] ss:$9 sm:$0xff] %v2349
    %2637 = vst [vmem:[%s2420] ss:$9 sm:$0xff] %v2350
    %v2638 = vld [vmem:[#allocation1] sm:$0xff]
    %2639 = vst [vmem:[#allocation1] ss:$9 sm:$0xff] %v2351
    %2640 = vst [vmem:[%s2408] ss:$9 sm:$0xff] %v2352
    %2641 = vst [vmem:[%s2410] ss:$9 sm:$0xff] %v2353
    %2642 = vst [vmem:[%s2412] ss:$9 sm:$0xff] %v2354
    %2643 = vst [vmem:[%s2414] ss:$9 sm:$0xff] %v2355
    %2644 = vst [vmem:[%s2416] ss:$9 sm:$0xff] %v2356
    %2645 = vst [vmem:[%s2418] ss:$9 sm:$0xff] %v2357
    %2646 = vst [vmem:[%s2420] ss:$9 sm:$0xff] %v2358
    %v2647 = vld [vmem:[#allocation1] sm:$0xff]
    %2648 = vst [vmem:[#allocation1] ss:$9 sm:$0xff] %v2359
    %2649 = vst [vmem:[%s2408] ss:$9 sm:$0xff] %v2360
    %2650 = vst [vmem:[%s2410] ss:$9 sm:$0xff] %v2361
    %2651 = vst [vmem:[%s2412] ss:$9 sm:$0xff] %v2362
    %2652 = vst [vmem:[%s2414] ss:$9 sm:$0xff] %v2363
    %2653 = vst [vmem:[%s2416] ss:$9 sm:$0xff] %v2364
    %2654 = vst [vmem:[%s2418] ss:$9 sm:$0xff] %v2365
    %2655 = vst [vmem:[%s2420] ss:$9 sm:$0xff] %v2366
    %v2656 = vld [vmem:[#allocation1] sm:$0xff]
    %2657 = vst [vmem:[#allocation1] ss:$9 sm:$0xff] %v2367
    %2658 = vst [vmem:[%s2408] ss:$9 sm:$0xff] %v2368
    %2659 = vst [vmem:[%s2410] ss:$9 sm:$0xff] %v2369
    %2660 = vst [vmem:[%s2412] ss:$9 sm:$0xff] %v2370
    %2661 = vst [vmem:[%s2414] ss:$9 sm:$0xff] %v2371
    %2662 = vst [vmem:[%s2416] ss:$9 sm:$0xff] %v2372
    %2663 = vst [vmem:[%s2418] ss:$9 sm:$0xff] %v2373
    %2664 = vst [vmem:[%s2420] ss:$9 sm:$0xff] %v2374
    %v2665 = vld [vmem:[#allocation1] sm:$0xff]
    %2666 = vst [vmem:[#allocation1] ss:$9 sm:$0xff] %v2375
    %2667 = vst [vmem:[%s2408] ss:$9 sm:$0xff] %v2376
    %2668 = vst [vmem:[%s2410] ss:$9 sm:$0xff] %v2377
    %2669 = vst [vmem:[%s2412] ss:$9 sm:$0xff] %v2378
    %2670 = vst [vmem:[%s2414] ss:$9 sm:$0xff] %v2379
    %2671 = vst [vmem:[%s2416] ss:$9 sm:$0xff] %v2380
    %2672 = vst [vmem:[%s2418] ss:$9 sm:$0xff] %v2381
    %2673 = vst [vmem:[%s2420] ss:$9 sm:$0xff] %v2382
    %v2674 = vld [vmem:[#allocation1] sm:$0xff]
    %2675 = vst [vmem:[#allocation1] ss:$9 sm:$0xff] %v2383
    %2676 = vst [vmem:[%s2408] ss:$9 sm:$0xff] %v2384
    %2677 = vst [vmem:[%s2410] ss:$9 sm:$0xff] %v2385
    %2678 = vst [vmem:[%s2412] ss:$9 sm:$0xff] %v2386
    %2679 = vst [vmem:[%s2414] ss:$9 sm:$0xff] %v2387
    %2680 = vst [vmem:[%s2416] ss:$9 sm:$0xff] %v2388
    %2681 = vst [vmem:[%s2418] ss:$9 sm:$0xff] %v2389
    %2682 = vst [vmem:[%s2420] ss:$9 sm:$0xff] %v2390
    %v2683 = vld [vmem:[#allocation1] sm:$0xff]
    %2684 = vst [vmem:[#allocation1] ss:$9 sm:$0xff] %v2391
    %2685 = vst [vmem:[%s2408] ss:$9 sm:$0xff] %v2392
    %2686 = vst [vmem:[%s2410] ss:$9 sm:$0xff] %v2393
    %2687 = vst [vmem:[%s2412] ss:$9 sm:$0xff] %v2394
    %2688 = vst [vmem:[%s2414] ss:$9 sm:$0xff] %v2395
    %2689 = vst [vmem:[%s2416] ss:$9 sm:$0xff] %v2396
    %2690 = vst [vmem:[%s2418] ss:$9 sm:$0xff] %v2397
    %2691 = vst [vmem:[%s2420] ss:$9 sm:$0xff] %v2398
    %v2692 = vld [vmem:[#allocation1] sm:$0xff]
    %2693 = vst [vmem:[#allocation1] ss:$9 sm:$0xff] %v2399
    %2694 = vst [vmem:[%s2408] ss:$9 sm:$0xff] %v2400
    %2695 = vst [vmem:[%s2410] ss:$9 sm:$0xff] %v2401
    %2696 = vst [vmem:[%s2412] ss:$9 sm:$0xff] %v2402
    %2697 = vst [vmem:[%s2414] ss:$9 sm:$0xff] %v2403
    %2698 = vst [vmem:[%s2416] ss:$9 sm:$0xff] %v2404
    %2699 = vst [vmem:[%s2418] ss:$9 sm:$0xff] %v2405
    %2700 = vst [vmem:[%s2420] ss:$9 sm:$0xff] %v2406
    %v2701 = vld [vmem:[#allocation1] sm:$0xff]
    %2702 = vset.pattern.permute.xlu0 0
    %2703 = vperm.xlu0 %2702, %v2422
    %v2704 = vpop.permute.xlu0 %2703
    %2705 = vset.pattern.permute.xlu0 0
    %2706 = vperm.xlu0 %2705, %v2431
    %v2707 = vpop.permute.xlu0 %2706
    %2708 = vset.pattern.permute.xlu0 0
    %2709 = vperm.xlu0 %2708, %v2440
    %v2710 = vpop.permute.xlu0 %2709
    %2711 = vset.pattern.permute.xlu0 0
    %2712 = vperm.xlu0 %2711, %v2449
    %v2713 = vpop.permute.xlu0 %2712
    %2714 = vset.pattern.permute.xlu0 0
    %2715 = vperm.xlu0 %2714, %v2458
    %v2716 = vpop.permute.xlu0 %2715
    %2717 = vset.pattern.permute.xlu0 0
    %2718 = vperm.xlu0 %2717, %v2467
    %v2719 = vpop.permute.xlu0 %2718
    %2720 = vset.pattern.permute.xlu0 0
    %2721 = vperm.xlu0 %2720, %v2476
    %v2722 = vpop.permute.xlu0 %2721
    %2723 = vset.pattern.permute.xlu0 0
    %2724 = vperm.xlu0 %2723, %v2485
    %v2725 = vpop.permute.xlu0 %2724
    %2726 = vset.pattern.permute.xlu0 0
    %2727 = vperm.xlu0 %2726, %v2494
    %v2728 = vpop.permute.xlu0 %2727
    %2729 = vset.pattern.permute.xlu0 0
    %2730 = vperm.xlu0 %2729, %v2503
    %v2731 = vpop.permute.xlu0 %2730
    %2732 = vset.pattern.permute.xlu0 0
    %2733 = vperm.xlu0 %2732, %v2512
    %v2734 = vpop.permute.xlu0 %2733
    %2735 = vset.pattern.permute.xlu0 0
    %2736 = vperm.xlu0 %2735, %v2521
    %v2737 = vpop.permute.xlu0 %2736
    %2738 = vset.pattern.permute.xlu0 0
    %2739 = vperm.xlu0 %2738, %v2530
    %v2740 = vpop.permute.xlu0 %2739
    %2741 = vset.pattern.permute.xlu0 0
    %2742 = vperm.xlu0 %2741, %v2539
    %v2743 = vpop.permute.xlu0 %2742
    %2744 = vset.pattern.permute.xlu0 0
    %2745 = vperm.xlu0 %2744, %v2548
    %v2746 = vpop.permute.xlu0 %2745
    %2747 = vset.pattern.permute.xlu0 0
    %2748 = vperm.xlu0 %2747, %v2557
    %v2749 = vpop.permute.xlu0 %2748
    %2750 = vset.pattern.permute.xlu0 0
    %2751 = vperm.xlu0 %2750, %v2566
    %v2752 = vpop.permute.xlu0 %2751
    %2753 = vset.pattern.permute.xlu0 0
    %2754 = vperm.xlu0 %2753, %v2575
    %v2755 = vpop.permute.xlu0 %2754
    %2756 = vset.pattern.permute.xlu0 0
    %2757 = vperm.xlu0 %2756, %v2584
    %v2758 = vpop.permute.xlu0 %2757
    %2759 = vset.pattern.permute.xlu0 0
    %2760 = vperm.xlu0 %2759, %v2593
    %v2761 = vpop.permute.xlu0 %2760
    %2762 = vset.pattern.permute.xlu0 0
    %2763 = vperm.xlu0 %2762, %v2602
    %v2764 = vpop.permute.xlu0 %2763
    %2765 = vset.pattern.permute.xlu0 0
    %2766 = vperm.xlu0 %2765, %v2611
    %v2767 = vpop.permute.xlu0 %2766
    %2768 = vset.pattern.permute.xlu0 0
    %2769 = vperm.xlu0 %2768, %v2620
    %v2770 = vpop.permute.xlu0 %2769
    %2771 = vset.pattern.permute.xlu0 0
    %2772 = vperm.xlu0 %2771, %v2629
    %v2773 = vpop.permute.xlu0 %2772
    %2774 = vset.pattern.permute.xlu0 0
    %2775 = vperm.xlu0 %2774, %v2638
    %v2776 = vpop.permute.xlu0 %2775
    %2777 = vset.pattern.permute.xlu0 0
    %2778 = vperm.xlu0 %2777, %v2647
    %v2779 = vpop.permute.xlu0 %2778
    %2780 = vset.pattern.permute.xlu0 0
    %2781 = vperm.xlu0 %2780, %v2656
    %v2782 = vpop.permute.xlu0 %2781
    %2783 = vset.pattern.permute.xlu0 0
    %2784 = vperm.xlu0 %2783, %v2665
    %v2785 = vpop.permute.xlu0 %2784
    %2786 = vset.pattern.permute.xlu0 0
    %2787 = vperm.xlu0 %2786, %v2674
    %v2788 = vpop.permute.xlu0 %2787
    %2789 = vset.pattern.permute.xlu0 0
    %2790 = vperm.xlu0 %2789, %v2683
    %v2791 = vpop.permute.xlu0 %2790
    %2792 = vset.pattern.permute.xlu0 0
    %2793 = vperm.xlu0 %2792, %v2692
    %v2794 = vpop.permute.xlu0 %2793
    %2795 = vset.pattern.permute.xlu0 0
    %2796 = vperm.xlu0 %2795, %v2701
    %v2797 = vpop.permute.xlu0 %2796
    %v2798 = vperm.slane %v2704, %v426
    %v2799 = vperm.slane %v2707, %v1828
    %v2800 = vsel %vm1830, %v2799, %v2798
    %v2801 = vperm.slane %v2710, %v1832
    %v2802 = vsel %vm1834, %v2801, %v2800
    %v2803 = vperm.slane %v2713, %v1836
    %v2804 = vsel %vm1838, %v2803, %v2802
    %v2805 = vperm.slane %v2716, %v1840
    %v2806 = vsel %vm1842, %v2805, %v2804
    %v2807 = vperm.slane %v2719, %v1844
    %v2808 = vsel %vm1846, %v2807, %v2806
    %v2809 = vperm.slane %v2722, %v1848
    %v2810 = vsel %vm1850, %v2809, %v2808
    %v2811 = vperm.slane %v2725, %v1852
    %v2812 = vsel %vm1854, %v2811, %v2810
    %v2813 = vperm.slane %v2728, %v1856
    %v2814 = vsel %vm1858, %v2813, %v2812
    %v2815 = vperm.slane %v2731, %v1860
    %v2816 = vsel %vm1862, %v2815, %v2814
    %v2817 = vperm.slane %v2734, %v1864
    %v2818 = vsel %vm1866, %v2817, %v2816
    %v2819 = vperm.slane %v2737, %v1868
    %v2820 = vsel %vm1870, %v2819, %v2818
    %v2821 = vperm.slane %v2740, %v1872
    %v2822 = vsel %vm1874, %v2821, %v2820
    %v2823 = vperm.slane %v2743, %v1876
    %v2824 = vsel %vm1878, %v2823, %v2822
    %v2825 = vperm.slane %v2746, %v1880
    %v2826 = vsel %vm1882, %v2825, %v2824
    %v2827 = vperm.slane %v2749, %v1884
    %v2828 = vsel %vm1886, %v2827, %v2826
    %v2829 = vperm.slane %v2752, %v426
    %v2830 = vperm.slane %v2755, %v1828
    %v2831 = vsel %vm1830, %v2830, %v2829
    %v2832 = vperm.slane %v2758, %v1832
    %v2833 = vsel %vm1834, %v2832, %v2831
    %v2834 = vperm.slane %v2761, %v1836
    %v2835 = vsel %vm1838, %v2834, %v2833
    %v2836 = vperm.slane %v2764, %v1840
    %v2837 = vsel %vm1842, %v2836, %v2835
    %v2838 = vperm.slane %v2767, %v1844
    %v2839 = vsel %vm1846, %v2838, %v2837
    %v2840 = vperm.slane %v2770, %v1848
    %v2841 = vsel %vm1850, %v2840, %v2839
    %v2842 = vperm.slane %v2773, %v1852
    %v2843 = vsel %vm1854, %v2842, %v2841
    %v2844 = vperm.slane %v2776, %v1856
    %v2845 = vsel %vm1858, %v2844, %v2843
    %v2846 = vperm.slane %v2779, %v1860
    %v2847 = vsel %vm1862, %v2846, %v2845
    %v2848 = vperm.slane %v2782, %v1864
    %v2849 = vsel %vm1866, %v2848, %v2847
    %v2850 = vperm.slane %v2785, %v1868
    %v2851 = vsel %vm1870, %v2850, %v2849
    %v2852 = vperm.slane %v2788, %v1872
    %v2853 = vsel %vm1874, %v2852, %v2851
    %v2854 = vperm.slane %v2791, %v1876
    %v2855 = vsel %vm1878, %v2854, %v2853
    %v2856 = vperm.slane %v2794, %v1880
    %v2857 = vsel %vm1882, %v2856, %v2855
    %v2858 = vperm.slane %v2797, %v1884
    %v2859 = vsel %vm1886, %v2858, %v2857
    %v2860 = vrot.slane %v2859, 7
    %v2861 = vsel %vm1920, %v2828, %v2860
    %2863 = vst.msk [vmem:[#allocation4] sm:$0x3] %vm1925, %v2861
    // Predicated region
    $region14: #{tpu_custom_call.1} parent=1 // pred_check
      _
    $region15: #{tpu_custom_call.1} parent=1 // pred_check_branch
      %2865 = sbr.rel (0) target = $region17
    $region16: #{tpu_custom_call.1} parent=1 // pred_region
      _
    $region17: #{tpu_custom_call.1} parent=1 // pred_fallthru
      _
    // Predicated region
    $region18: #{tpu_custom_call.1} parent=1 // pred_check
      _
    $region19: #{tpu_custom_call.1} parent=1 // pred_check_branch
      %2867 = sbr.rel (0) target = $region21
    $region20: #{tpu_custom_call.1} parent=1 // pred_region
      %2869 = vsyncadd [#allocation3], 0
      %s2871 = sshll.u32 [#allocation2], 4
      %s2872 = int_to_ptr.vmem [resolvable:$true] %s2871
      %s2873 = sshll.u32 %s4, 4
      %s2874 = int_to_ptr.hbm [resolvable:$true] %s2873
      %2876 = dma.vmem_to_hbm [thread:$0]  %s2872, 32, %s2874, [#allocation3]
    $region21: #{tpu_custom_call.1} parent=1 // pred_fallthru
      _
    // Predicated region
    $region22: #{tpu_custom_call.1} parent=1 // pred_check
      _
    $region23: #{tpu_custom_call.1} parent=1 // pred_check_branch
      %2878 = sbr.rel (0) target = $region25
    $region24: #{tpu_custom_call.1} parent=1 // pred_region
      %2880 = vsyncadd [#allocation5], 0
      %s2882 = sshll.u32 [#allocation4], 4
      %s2883 = int_to_ptr.vmem [resolvable:$true] %s2882
      %s2884 = sshll.u32 %s5, 4
      %s2885 = int_to_ptr.hbm [resolvable:$true] %s2884
      %2887 = dma.vmem_to_hbm [thread:$0]  %s2883, 32, %s2885, [#allocation5]
    $region25: #{tpu_custom_call.1} parent=1 // pred_fallthru
      _
    // Predicated region
    $region26: #{tpu_custom_call.1} parent=1 // pred_check
      _
    $region27: #{tpu_custom_call.1} parent=1 // pred_check_branch
      %2889 = sbr.rel (0) target = $region29
    $region28: #{tpu_custom_call.1} parent=1 // pred_region
      _
    $region29: #{tpu_custom_call.1} parent=1 // pred_fallthru
      _
    // Predicated region
    $region30: #{tpu_custom_call.1} parent=1 // pred_check
      _
    $region31: #{tpu_custom_call.1} parent=1 // pred_check_branch
      %2891 = sbr.rel (0) target = $region33
    $region32: #{tpu_custom_call.1} parent=1 // pred_region
      %2893 = dma.done [#allocation3], 32
    $region33: #{tpu_custom_call.1} parent=1 // pred_fallthru
      _
    // Predicated region
    $region34: #{tpu_custom_call.1} parent=1 // pred_check
      _
    $region35: #{tpu_custom_call.1} parent=1 // pred_check_branch
      %2895 = sbr.rel (0) target = $region37
    $region36: #{tpu_custom_call.1} parent=1 // pred_region
      %2897 = dma.done [#allocation5], 32
    $region37: #{tpu_custom_call.1} parent=1 // pred_fallthru
      _
    %2898 = vsyncpa [#allocation3], 1
    %2899 = vsyncpa [#allocation5], 1

</llo_original>
